<compile_context>
chip_gen: v5e
topology: v5e:2x2
jax: 0.10.0
libtpu: 0.0.40
codegen_flags: <defaults>
</compile_context>

<pallas_src>
import numpy as np
import jax
import jax.numpy as jnp
from jax import lax
from jax.experimental import pallas as pl
from jax.experimental.pallas import tpu as pltpu

# ---------------- CAE config (small, deterministic, consistent with the module) ----
DILATION = (1, 2)                 # cfg.dilation
K = len(DILATION)                 # k
M = 4                             # cfg.M
LF = 3                            # cfg.Lf (odd -> "same" padding)
LENGTH = 16                       # cfg.length
BOTTLENECK = 16                   # cfg.bottleneck_nn
NUM_CLASSES = 3                   # cfg.num_classes
HIDDEN = 32                       # Classifier hidden_nn
PADS = tuple(d * (LF - 1) // 2 for d in DILATION)
PAD_MAX = max(PADS)
KML = K * M * LENGTH              # 128
XW = LENGTH + 2 * PAD_MAX         # 20 (pre-padded signal width)
OUT_W = 128                       # packed lane-dense output slab width
CLS_PAD = OUT_W - LENGTH - BOTTLENECK   # 96 (class logits zero-padded to here)
TN = 256                          # batch tile (fills MXU rows, amortizes grid overhead)
NEG_SLOPE = 0.01                  # nn.LeakyReLU default negative slope


def _leaky(x):
    return jnp.where(x >= 0, x, NEG_SLOPE * x)


# ---------------- banded conv -> matmul weight construction (host side) ------------
def _build_encoder_band(We, be):
    """Dilated Conv1d bank (+concat+flatten) as x_padded @ Wenc (XW, KML) + benc."""
    rows, cols, widx = [], [], []
    for i, d in enumerate(DILATION):
        p = PADS[i]
        for m in range(M):
            for j in range(LF):
                for t in range(LENGTH):
                    rows.append(PAD_MAX - p + d * j + t)            # tap into padded x
                    cols.append((i * M + m) * LENGTH + t)           # flattened feature
                    widx.append((i * M + m) * LF + j)
    w_flat = We.reshape(-1).astype(jnp.float32)
    wenc = jnp.zeros((XW, KML), jnp.float32).at[
        np.asarray(rows), np.asarray(cols)].add(w_flat[np.asarray(widx)])
    benc = jnp.repeat(be.reshape(-1).astype(jnp.float32), LENGTH).reshape(1, KML)
    return wenc, benc


def _build_decoder_band(Wd, bd):
    """ConvTranspose1d bank (summed over k dilations) as dec @ Wdc (KML, LENGTH) + bdc."""
    rows, cols, widx = [], [], []
    for i, d in enumerate(DILATION):
        p = PADS[i]
        for m in range(M):
            for j in range(LF):
                for t in range(LENGTH):
                    s = t + p - d * j                               # source position in dec
                    if 0 <= s < LENGTH:
                        rows.append((i * M + m) * LENGTH + s)
                        cols.append(t)
                        widx.append((i * M + m) * LF + j)
    w_flat = Wd.reshape(-1).astype(jnp.float32)
    wdc = jnp.zeros((KML, LENGTH), jnp.float32).at[
        np.asarray(rows), np.asarray(cols)].add(w_flat[np.asarray(widx)])
    bdc = jnp.broadcast_to(jnp.sum(bd).astype(jnp.float32), (1, LENGTH))
    return wdc, bdc


# ---------------- fused Pallas kernel ------------------------------------------------
def _cae_kernel(x_ref, wenc_ref, benc_ref, wfcT_ref, bfc_ref,
                wdecT_ref, bdec_ref, wdc_ref, bdc_ref,
                w1T_ref, b1_ref, w2T_ref, b2_ref, out_ref):
    f32 = jnp.float32
    x = x_ref[...]                                                       # (TN, XW)

    # Encoder: dilated conv bank as one banded matmul -> LeakyReLU ->
    #          fc_conv_bn -> LeakyReLU -> bottleneck.
    feat = _leaky(jnp.dot(x, wenc_ref[...], preferred_element_type=f32)
                  + benc_ref[...])                                       # (TN, KML)
    bn = _leaky(jnp.dot(feat, wfcT_ref[...], preferred_element_type=f32)
                + bfc_ref[...])                                          # (TN, B)

    # Decoder: fc_bn_deco -> LeakyReLU -> transposed-conv bank (sum over k)
    #          as one banded matmul -> sigmoid.
    dec = _leaky(jnp.dot(bn, wdecT_ref[...], preferred_element_type=f32)
                 + bdec_ref[...])                                        # (TN, KML)
    recon = jnp.dot(dec, wdc_ref[...], preferred_element_type=f32) + bdc_ref[...]
    pred_x = 1.0 / (1.0 + jnp.exp(-recon))                               # (TN, LENGTH)

    # Classifier: Linear -> LeakyReLU -> Linear (logits; softmax is get_probs, separate).
    h = _leaky(jnp.dot(bn, w1T_ref[...], preferred_element_type=f32) + b1_ref[...])
    cls = jnp.dot(h, w2T_ref[...], preferred_element_type=f32) + b2_ref[...]  # (TN, CLS_PAD)

    # Single lane-dense 128-wide store: [pred_x | bottleneck | padded logits].
    out_ref[...] = jnp.concatenate([pred_x, bn, cls], axis=-1)


# ---------------- parameters ---------------------------------------------------------
def init_params(key):
    keys = jax.random.split(key, 12)
    s = 0.1
    p = {}
    p["We"] = s * jax.random.normal(keys[0], (K, M, LF), jnp.float32)    # Conv1d(1,M,Lf) per dilation
    p["be"] = s * jax.random.normal(keys[1], (K, M), jnp.float32)
    p["Wfc"] = s * jax.random.normal(keys[2], (BOTTLENECK, KML), jnp.float32)
    p["bfc"] = s * jax.random.normal(keys[3], (BOTTLENECK,), jnp.float32)
    p["Wdec"] = s * jax.random.normal(keys[4], (KML, BOTTLENECK), jnp.float32)
    p["bdec"] = s * jax.random.normal(keys[5], (KML,), jnp.float32)
    p["Wd"] = s * jax.random.normal(keys[6], (K, M, LF), jnp.float32)    # ConvTranspose1d(M,1,Lf)
    p["bd"] = s * jax.random.normal(keys[7], (K,), jnp.float32)
    p["W1"] = s * jax.random.normal(keys[8], (HIDDEN, BOTTLENECK), jnp.float32)
    p["b1"] = s * jax.random.normal(keys[9], (HIDDEN,), jnp.float32)
    p["W2"] = s * jax.random.normal(keys[10], (NUM_CLASSES, HIDDEN), jnp.float32)
    p["b2"] = s * jax.random.normal(keys[11], (NUM_CLASSES,), jnp.float32)
    return p


# ---------------- wrapper ------------------------------------------------------------
def cae_forward_pallas(x, params):
    """x: (N, 1, LENGTH) float32 (already noised/clipped if apply_noise)."""
    N = x.shape[0]
    xs = x[:, 0, :].astype(jnp.float32)
    n_pad = ((N + TN - 1) // TN) * TN
    x_p = jnp.zeros((n_pad, XW), jnp.float32)
    x_p = x_p.at[:N, PAD_MAX:PAD_MAX + LENGTH].set(xs)

    wenc, benc = _build_encoder_band(params["We"], params["be"])
    wdc, bdc = _build_decoder_band(params["Wd"], params["bd"])
    wfcT = params["Wfc"].T                        # (KML, B)
    bfc = params["bfc"].reshape(1, -1)
    wdecT = params["Wdec"].T                      # (B, KML)
    bdec = params["bdec"].reshape(1, -1)
    w1T = params["W1"].T                          # (B, H)
    b1 = params["b1"].reshape(1, -1)
    # zero-pad the classifier head so the packed output slab is exactly 128 lanes
    w2T = jnp.zeros((HIDDEN, CLS_PAD), jnp.float32).at[:, :NUM_CLASSES].set(params["W2"].T)
    b2 = jnp.zeros((1, CLS_PAD), jnp.float32).at[:, :NUM_CLASSES].set(params["b2"])

    def full(a):
        return pl.BlockSpec(a.shape, lambda n: (0, 0))   # VMEM-resident across grid steps

    out = pl.pallas_call(
        _cae_kernel,
        out_shape=jax.ShapeDtypeStruct((n_pad, OUT_W), jnp.float32),
        grid=(n_pad // TN,),
        in_specs=[
            pl.BlockSpec((TN, XW), lambda n: (n, 0)),    # padded signal tile
            full(wenc), full(benc),                      # encoder conv bank (banded)
            full(wfcT), full(bfc),                       # fc_conv_bn
            full(wdecT), full(bdec),                     # fc_bn_deco
            full(wdc), full(bdc),                        # decoder deconv bank (banded)
            full(w1T), full(b1),                         # classifier fc1
            full(w2T), full(b2),                         # classifier fc2 (lane-padded)
        ],
        out_specs=pl.BlockSpec((TN, OUT_W), lambda n: (n, 0)),
        compiler_params=pltpu.CompilerParams(dimension_semantics=("parallel",)),
    )(x_p, wenc, benc, wfcT, bfc, wdecT, bdec, wdc, bdc, w1T, b1, w2T, b2)

    pred_X = out[:N, :LENGTH][:, None, :]                                  # (N, 1, LENGTH)
    bottleneck = out[:N, LENGTH:LENGTH + BOTTLENECK]                       # (N, BOTTLENECK)
    pred_class = out[:N, LENGTH + BOTTLENECK:LENGTH + BOTTLENECK + NUM_CLASSES]  # (N, C)
    return pred_X, pred_class, bottleneck


# ---------------- pure-JAX reference (for verification) ------------------------------
def cae_forward_reference(x, params):
    hp = lax.Precision.HIGHEST
    xs = x.astype(jnp.float32)
    convs = []
    for i, d in enumerate(DILATION):
        w = params["We"][i][:, None, :]                      # (M, 1, LF) OIH
        o = lax.conv_general_dilated(xs, w, (1,), [(PADS[i], PADS[i])],
                                     rhs_dilation=(d,),
                                     dimension_numbers=("NCH", "OIH", "NCH"),
                                     precision=hp)
        convs.append(o + params["be"][i][None, :, None])
    cat = jnp.concatenate(convs, axis=1)                     # (N, K*M, L)
    feat = _leaky(cat.reshape(cat.shape[0], -1))
    bn = _leaky(jnp.dot(feat, params["Wfc"].T, precision=hp) + params["bfc"])
    dec = _leaky(jnp.dot(bn, params["Wdec"].T, precision=hp) + params["bdec"])
    dec = dec.reshape(-1, K * M, LENGTH)
    outs = []
    for i, d in enumerate(DILATION):
        z = dec[:, i * M:(i + 1) * M, :]
        wt = params["Wd"][i][:, None, :]                     # (M, 1, LF)
        wc = jnp.flip(wt, axis=-1).transpose(1, 0, 2)        # equivalent fwd conv kernel
        pconv = d * (LF - 1) - PADS[i]
        o = lax.conv_general_dilated(z, wc, (1,), [(pconv, pconv)],
                                     rhs_dilation=(d,),
                                     dimension_numbers=("NCH", "OIH", "NCH"),
                                     precision=hp)
        outs.append(o + params["bd"][i])
    pred_X = jax.nn.sigmoid(sum(outs))
    h = _leaky(jnp.dot(bn, params["W1"].T, precision=hp) + params["b1"])
    pred_class = jnp.dot(h, params["W2"].T, precision=hp) + params["b2"]
    return pred_X, pred_class, bn


if __name__ == "__main__":
    key = jax.random.PRNGKey(0)
    k_param, k_x, k_noise = jax.random.split(key, 3)
    params = init_params(k_param)

    N = 2
    x = jax.random.uniform(k_x, (N, 1, LENGTH), jnp.float32)     # signal in [0, 1]

    # apply_noise=True path (torch.normal replaced by deterministic JAX PRNG noise)
    noise = 0.05 * jax.random.normal(k_noise, x.shape, jnp.float32)
    x_in = jnp.clip(x + noise, 0.0, 1.0)

    pred_X, pred_class, bottleneck = jax.block_until_ready(
        cae_forward_pallas(x_in, params))

    # sanity: shapes match the torch forward
    assert pred_X.shape == (N, 1, LENGTH)
    assert pred_class.shape == (N, NUM_CLASSES)
    assert bottleneck.shape == (N, BOTTLENECK)

    ref_X, ref_class, ref_bn = cae_forward_reference(x_in, params)
    for a, b in ((pred_X, ref_X), (pred_class, ref_class), (bottleneck, ref_bn)):
        err = float(jnp.max(jnp.abs(a - b)))
        assert jnp.allclose(a, b, rtol=5e-3, atol=5e-3), f"mismatch, max abs err={err}"

    print("KERNEL_OK")
</pallas_src>

<mosaic_0001>
module attributes {stable_mosaic.version = 11 : i64} {
  func.func @_cae_kernel(%arg0: i32, %arg1: memref<256x20xf32, #tpu.memory_space<vmem>>, %arg2: memref<20x128xf32, #tpu.memory_space<vmem>>, %arg3: memref<1x128xf32, #tpu.memory_space<vmem>>, %arg4: memref<128x16xf32, #tpu.memory_space<vmem>>, %arg5: memref<1x16xf32, #tpu.memory_space<vmem>>, %arg6: memref<16x128xf32, #tpu.memory_space<vmem>>, %arg7: memref<1x128xf32, #tpu.memory_space<vmem>>, %arg8: memref<128x16xf32, #tpu.memory_space<vmem>>, %arg9: memref<1x16xf32, #tpu.memory_space<vmem>>, %arg10: memref<16x32xf32, #tpu.memory_space<vmem>>, %arg11: memref<1x32xf32, #tpu.memory_space<vmem>>, %arg12: memref<32x96xf32, #tpu.memory_space<vmem>>, %arg13: memref<1x96xf32, #tpu.memory_space<vmem>>, %arg14: memref<256x128xf32, #tpu.memory_space<vmem>>) attributes {dimension_semantics = [#tpu.dimension_semantics<parallel>], iteration_bounds = array<i64: 1>, scalar_prefetch = 0 : i64, scratch_operands = 0 : i64, tpu.core_type = #tpu.core_type<tc>, window_params = [{transform_indices = @transform_0, window_bounds = array<i64: 256, 20>}, {pipeline_mode = #tpu.pipeline_mode<synchronous>, transform_indices = @transform_1, window_bounds = array<i64: 20, 128>}, {pipeline_mode = #tpu.pipeline_mode<synchronous>, transform_indices = @transform_2, window_bounds = array<i64: 1, 128>}, {pipeline_mode = #tpu.pipeline_mode<synchronous>, transform_indices = @transform_3, window_bounds = array<i64: 128, 16>}, {pipeline_mode = #tpu.pipeline_mode<synchronous>, transform_indices = @transform_4, window_bounds = array<i64: 1, 16>}, {pipeline_mode = #tpu.pipeline_mode<synchronous>, transform_indices = @transform_5, window_bounds = array<i64: 16, 128>}, {pipeline_mode = #tpu.pipeline_mode<synchronous>, transform_indices = @transform_6, window_bounds = array<i64: 1, 128>}, {pipeline_mode = #tpu.pipeline_mode<synchronous>, transform_indices = @transform_7, window_bounds = array<i64: 128, 16>}, {pipeline_mode = #tpu.pipeline_mode<synchronous>, transform_indices = @transform_8, window_bounds = array<i64: 1, 16>}, {pipeline_mode = #tpu.pipeline_mode<synchronous>, transform_indices = @transform_9, window_bounds = array<i64: 16, 32>}, {pipeline_mode = #tpu.pipeline_mode<synchronous>, transform_indices = @transform_10, window_bounds = array<i64: 1, 32>}, {pipeline_mode = #tpu.pipeline_mode<synchronous>, transform_indices = @transform_11, window_bounds = array<i64: 32, 96>}, {pipeline_mode = #tpu.pipeline_mode<synchronous>, transform_indices = @transform_12, window_bounds = array<i64: 1, 96>}, {transform_indices = @transform_13, window_bounds = array<i64: 256, 128>}]} {
    %c0 = arith.constant 0 : index
    %c0_0 = arith.constant 0 : index
    %0 = vector.load %arg1[%c0, %c0_0] : memref<256x20xf32, #tpu.memory_space<vmem>>, vector<256x20xf32>
    %c0_1 = arith.constant 0 : index
    %c0_2 = arith.constant 0 : index
    %1 = vector.load %arg2[%c0_1, %c0_2] : memref<20x128xf32, #tpu.memory_space<vmem>>, vector<20x128xf32>
    %cst = arith.constant dense<0.000000e+00> : vector<256x128xf32>
    %2 = tpu.matmul %0, %1, %cst {dimension_numbers = #tpu.dot_dimension_numbers<[1], [0], [0], [1], [0, 0, 1, 1], [], []>} : vector<256x20xf32>, vector<20x128xf32>, vector<256x128xf32> -> vector<256x128xf32>
    %c0_3 = arith.constant 0 : index
    %c0_4 = arith.constant 0 : index
    %3 = vector.load %arg3[%c0_3, %c0_4] : memref<1x128xf32, #tpu.memory_space<vmem>>, vector<1x128xf32>
    %4 = vector.broadcast %3 : vector<1x128xf32> to vector<256x128xf32>
    %5 = arith.addf %2, %4 : vector<256x128xf32>
    %cst_5 = arith.constant 0.000000e+00 : f32
    %6 = vector.broadcast %cst_5 : f32 to vector<256x128xf32>
    %7 = arith.cmpf oge, %5, %6 : vector<256x128xf32>
    %cst_6 = arith.constant 0.00999999977 : f32
    %8 = vector.broadcast %cst_6 : f32 to vector<256x128xf32>
    %9 = arith.mulf %8, %5 : vector<256x128xf32>
    %10 = arith.select %7, %5, %9 : vector<256x128xi1>, vector<256x128xf32>
    %c0_7 = arith.constant 0 : index
    %c0_8 = arith.constant 0 : index
    %11 = vector.load %arg4[%c0_7, %c0_8] : memref<128x16xf32, #tpu.memory_space<vmem>>, vector<128x16xf32>
    %cst_9 = arith.constant dense<0.000000e+00> : vector<256x16xf32>
    %12 = tpu.matmul %10, %11, %cst_9 {dimension_numbers = #tpu.dot_dimension_numbers<[1], [0], [0], [1], [0, 0, 1, 1], [], []>} : vector<256x128xf32>, vector<128x16xf32>, vector<256x16xf32> -> vector<256x16xf32>
    %c0_10 = arith.constant 0 : index
    %c0_11 = arith.constant 0 : index
    %13 = vector.load %arg5[%c0_10, %c0_11] : memref<1x16xf32, #tpu.memory_space<vmem>>, vector<1x16xf32>
    %14 = vector.broadcast %13 : vector<1x16xf32> to vector<256x16xf32>
    %15 = arith.addf %12, %14 : vector<256x16xf32>
    %cst_12 = arith.constant 0.000000e+00 : f32
    %16 = vector.broadcast %cst_12 : f32 to vector<256x16xf32>
    %17 = arith.cmpf oge, %15, %16 : vector<256x16xf32>
    %cst_13 = arith.constant 0.00999999977 : f32
    %18 = vector.broadcast %cst_13 : f32 to vector<256x16xf32>
    %19 = arith.mulf %18, %15 : vector<256x16xf32>
    %20 = arith.select %17, %15, %19 : vector<256x16xi1>, vector<256x16xf32>
    %c0_14 = arith.constant 0 : index
    %c0_15 = arith.constant 0 : index
    %21 = vector.load %arg6[%c0_14, %c0_15] : memref<16x128xf32, #tpu.memory_space<vmem>>, vector<16x128xf32>
    %cst_16 = arith.constant dense<0.000000e+00> : vector<256x128xf32>
    %22 = tpu.matmul %20, %21, %cst_16 {dimension_numbers = #tpu.dot_dimension_numbers<[1], [0], [0], [1], [0, 0, 1, 1], [], []>} : vector<256x16xf32>, vector<16x128xf32>, vector<256x128xf32> -> vector<256x128xf32>
    %c0_17 = arith.constant 0 : index
    %c0_18 = arith.constant 0 : index
    %23 = vector.load %arg7[%c0_17, %c0_18] : memref<1x128xf32, #tpu.memory_space<vmem>>, vector<1x128xf32>
    %24 = vector.broadcast %23 : vector<1x128xf32> to vector<256x128xf32>
    %25 = arith.addf %22, %24 : vector<256x128xf32>
    %cst_19 = arith.constant 0.000000e+00 : f32
    %26 = vector.broadcast %cst_19 : f32 to vector<256x128xf32>
    %27 = arith.cmpf oge, %25, %26 : vector<256x128xf32>
    %cst_20 = arith.constant 0.00999999977 : f32
    %28 = vector.broadcast %cst_20 : f32 to vector<256x128xf32>
    %29 = arith.mulf %28, %25 : vector<256x128xf32>
    %30 = arith.select %27, %25, %29 : vector<256x128xi1>, vector<256x128xf32>
    %c0_21 = arith.constant 0 : index
    %c0_22 = arith.constant 0 : index
    %31 = vector.load %arg8[%c0_21, %c0_22] : memref<128x16xf32, #tpu.memory_space<vmem>>, vector<128x16xf32>
    %cst_23 = arith.constant dense<0.000000e+00> : vector<256x16xf32>
    %32 = tpu.matmul %30, %31, %cst_23 {dimension_numbers = #tpu.dot_dimension_numbers<[1], [0], [0], [1], [0, 0, 1, 1], [], []>} : vector<256x128xf32>, vector<128x16xf32>, vector<256x16xf32> -> vector<256x16xf32>
    %c0_24 = arith.constant 0 : index
    %c0_25 = arith.constant 0 : index
    %33 = vector.load %arg9[%c0_24, %c0_25] : memref<1x16xf32, #tpu.memory_space<vmem>>, vector<1x16xf32>
    %34 = vector.broadcast %33 : vector<1x16xf32> to vector<256x16xf32>
    %35 = arith.addf %32, %34 : vector<256x16xf32>
    %cst_26 = arith.constant 0.000000e+00 : f32
    %36 = vector.broadcast %cst_26 : f32 to vector<256x16xf32>
    %37 = arith.subf %36, %35 : vector<256x16xf32>
    %38 = math.exp %37 : vector<256x16xf32>
    %cst_27 = arith.constant 1.000000e+00 : f32
    %39 = vector.broadcast %cst_27 : f32 to vector<256x16xf32>
    %40 = arith.addf %39, %38 : vector<256x16xf32>
    %cst_28 = arith.constant 1.000000e+00 : f32
    %41 = vector.broadcast %cst_28 : f32 to vector<256x16xf32>
    %42 = arith.divf %41, %40 : vector<256x16xf32>
    %c0_29 = arith.constant 0 : index
    %c0_30 = arith.constant 0 : index
    %43 = vector.load %arg10[%c0_29, %c0_30] : memref<16x32xf32, #tpu.memory_space<vmem>>, vector<16x32xf32>
    %cst_31 = arith.constant dense<0.000000e+00> : vector<256x32xf32>
    %44 = tpu.matmul %20, %43, %cst_31 {dimension_numbers = #tpu.dot_dimension_numbers<[1], [0], [0], [1], [0, 0, 1, 1], [], []>} : vector<256x16xf32>, vector<16x32xf32>, vector<256x32xf32> -> vector<256x32xf32>
    %c0_32 = arith.constant 0 : index
    %c0_33 = arith.constant 0 : index
    %45 = vector.load %arg11[%c0_32, %c0_33] : memref<1x32xf32, #tpu.memory_space<vmem>>, vector<1x32xf32>
    %46 = vector.broadcast %45 : vector<1x32xf32> to vector<256x32xf32>
    %47 = arith.addf %44, %46 : vector<256x32xf32>
    %cst_34 = arith.constant 0.000000e+00 : f32
    %48 = vector.broadcast %cst_34 : f32 to vector<256x32xf32>
    %49 = arith.cmpf oge, %47, %48 : vector<256x32xf32>
    %cst_35 = arith.constant 0.00999999977 : f32
    %50 = vector.broadcast %cst_35 : f32 to vector<256x32xf32>
    %51 = arith.mulf %50, %47 : vector<256x32xf32>
    %52 = arith.select %49, %47, %51 : vector<256x32xi1>, vector<256x32xf32>
    %c0_36 = arith.constant 0 : index
    %c0_37 = arith.constant 0 : index
    %53 = vector.load %arg12[%c0_36, %c0_37] : memref<32x96xf32, #tpu.memory_space<vmem>>, vector<32x96xf32>
    %cst_38 = arith.constant dense<0.000000e+00> : vector<256x96xf32>
    %54 = tpu.matmul %52, %53, %cst_38 {dimension_numbers = #tpu.dot_dimension_numbers<[1], [0], [0], [1], [0, 0, 1, 1], [], []>} : vector<256x32xf32>, vector<32x96xf32>, vector<256x96xf32> -> vector<256x96xf32>
    %c0_39 = arith.constant 0 : index
    %c0_40 = arith.constant 0 : index
    %55 = vector.load %arg13[%c0_39, %c0_40] : memref<1x96xf32, #tpu.memory_space<vmem>>, vector<1x96xf32>
    %56 = vector.broadcast %55 : vector<1x96xf32> to vector<256x96xf32>
    %57 = arith.addf %54, %56 : vector<256x96xf32>
    %58 = tpu.concatenate %42, %20, %57 in 1 : vector<256x16xf32>, vector<256x16xf32>, vector<256x96xf32> -> vector<256x128xf32>
    %c0_41 = arith.constant 0 : index
    %c0_42 = arith.constant 0 : index
    %59 = vector.load %arg14[%c0_41, %c0_42] : memref<256x128xf32, #tpu.memory_space<vmem>>, vector<256x128xf32>
    tpu.vector_store %arg14[%c0_41, %c0_42], %58 {strides = array<i32>} : memref<256x128xf32, #tpu.memory_space<vmem>>, vector<256x128xf32>,
    return
  }
  func.func @transform_0(%arg0: i32) -> (i32, i32) {
    %c0_i32 = arith.constant 0 : i32
    %c0_i32_0 = arith.constant 0 : i32
    return %arg0, %c0_i32 : i32, i32
  }
  func.func @transform_1(%arg0: i32) -> (i32, i32) {
    %c0_i32 = arith.constant 0 : i32
    %c0_i32_0 = arith.constant 0 : i32
    %c0_i32_1 = arith.constant 0 : i32
    return %c0_i32, %c0_i32_0 : i32, i32
  }
  func.func @transform_2(%arg0: i32) -> (i32, i32) {
    %c0_i32 = arith.constant 0 : i32
    %c0_i32_0 = arith.constant 0 : i32
    %c0_i32_1 = arith.constant 0 : i32
    return %c0_i32, %c0_i32_0 : i32, i32
  }
  func.func @transform_3(%arg0: i32) -> (i32, i32) {
    %c0_i32 = arith.constant 0 : i32
    %c0_i32_0 = arith.constant 0 : i32
    %c0_i32_1 = arith.constant 0 : i32
    return %c0_i32, %c0_i32_0 : i32, i32
  }
  func.func @transform_4(%arg0: i32) -> (i32, i32) {
    %c0_i32 = arith.constant 0 : i32
    %c0_i32_0 = arith.constant 0 : i32
    %c0_i32_1 = arith.constant 0 : i32
    return %c0_i32, %c0_i32_0 : i32, i32
  }
  func.func @transform_5(%arg0: i32) -> (i32, i32) {
    %c0_i32 = arith.constant 0 : i32
    %c0_i32_0 = arith.constant 0 : i32
    %c0_i32_1 = arith.constant 0 : i32
    return %c0_i32, %c0_i32_0 : i32, i32
  }
  func.func @transform_6(%arg0: i32) -> (i32, i32) {
    %c0_i32 = arith.constant 0 : i32
    %c0_i32_0 = arith.constant 0 : i32
    %c0_i32_1 = arith.constant 0 : i32
    return %c0_i32, %c0_i32_0 : i32, i32
  }
  func.func @transform_7(%arg0: i32) -> (i32, i32) {
    %c0_i32 = arith.constant 0 : i32
    %c0_i32_0 = arith.constant 0 : i32
    %c0_i32_1 = arith.constant 0 : i32
    return %c0_i32, %c0_i32_0 : i32, i32
  }
  func.func @transform_8(%arg0: i32) -> (i32, i32) {
    %c0_i32 = arith.constant 0 : i32
    %c0_i32_0 = arith.constant 0 : i32
    %c0_i32_1 = arith.constant 0 : i32
    return %c0_i32, %c0_i32_0 : i32, i32
  }
  func.func @transform_9(%arg0: i32) -> (i32, i32) {
    %c0_i32 = arith.constant 0 : i32
    %c0_i32_0 = arith.constant 0 : i32
    %c0_i32_1 = arith.constant 0 : i32
    return %c0_i32, %c0_i32_0 : i32, i32
  }
  func.func @transform_10(%arg0: i32) -> (i32, i32) {
    %c0_i32 = arith.constant 0 : i32
    %c0_i32_0 = arith.constant 0 : i32
    %c0_i32_1 = arith.constant 0 : i32
    return %c0_i32, %c0_i32_0 : i32, i32
  }
  func.func @transform_11(%arg0: i32) -> (i32, i32) {
    %c0_i32 = arith.constant 0 : i32
    %c0_i32_0 = arith.constant 0 : i32
    %c0_i32_1 = arith.constant 0 : i32
    return %c0_i32, %c0_i32_0 : i32, i32
  }
  func.func @transform_12(%arg0: i32) -> (i32, i32) {
    %c0_i32 = arith.constant 0 : i32
    %c0_i32_0 = arith.constant 0 : i32
    %c0_i32_1 = arith.constant 0 : i32
    return %c0_i32, %c0_i32_0 : i32, i32
  }
  func.func @transform_13(%arg0: i32) -> (i32, i32) {
    %c0_i32 = arith.constant 0 : i32
    %c0_i32_0 = arith.constant 0 : i32
    return %arg0, %c0_i32 : i32, i32
  }
}

</mosaic_0001>

<llo_original>
// kernel: tpu_custom_call.1
$region0: #{tpu_custom_call.1}
  #allocation0 [shape = 'u32[]', space=smem, size = 0x4, offset = 0x4, fixed_abs, tag = 'smem constant byte address 0x4 - core index']
  #allocation1 [shape = 'u32[72,128]{1,0:T(1,128)}', space=vmem, size = 0x9000, scoped, tag = 'internal scratch']
  %s0 = inlined_call_operand.vmem [shape: f32[256,20], index: 0, kind: input, shape index: {}]
  %s1 = inlined_call_operand.vmem [shape: f32[20,128], index: 1, kind: input, shape index: {}]
  %s2 = inlined_call_operand.vmem [shape: f32[1,128], index: 2, kind: input, shape index: {}]
  %s3 = inlined_call_operand.vmem [shape: f32[128,16], index: 3, kind: input, shape index: {}]
  %s4 = inlined_call_operand.vmem [shape: f32[1,16], index: 4, kind: input, shape index: {}]
  %s5 = inlined_call_operand.vmem [shape: f32[16,128], index: 5, kind: input, shape index: {}]
  %s6 = inlined_call_operand.vmem [shape: f32[1,128], index: 6, kind: input, shape index: {}]
  %s7 = inlined_call_operand.vmem [shape: f32[128,16], index: 7, kind: input, shape index: {}]
  %s8 = inlined_call_operand.vmem [shape: f32[1,16], index: 8, kind: input, shape index: {}]
  %s9 = inlined_call_operand.vmem [shape: f32[16,32], index: 9, kind: input, shape index: {}]
  %s10 = inlined_call_operand.vmem [shape: f32[1,32], index: 10, kind: input, shape index: {}]
  %s11 = inlined_call_operand.vmem [shape: f32[32,96], index: 11, kind: input, shape index: {}]
  %s12 = inlined_call_operand.vmem [shape: f32[1,96], index: 12, kind: input, shape index: {}]
  %s13 = inlined_call_operand.hbm [shape: f32[256,128], index: 13, kind: output, shape index: {}]
  %s14 = sld [smem:[#allocation0]]
  $region62: #{tpu_custom_call.1} parent=0
    _
  %s16 = ssub.s32 1, %s14
  %s17 = scalar_select 0, %s16, %s14
  $region1: #{tpu_custom_call.1} parent=0
    #allocation2 [shape = 'u8[131072]{0}', space=vmem, size = 0x20000, scoped, tag = 'output window, operand 0, single buffered']
    #allocation3 [shape = 's32[1]{0}', space=sflag, size = 0x4, scoped, tag = 'scoped memory for tpu_custom_call.1']
    %18 = vsyncpa [#allocation3], 0
    // Predicated region
    $region2: #{tpu_custom_call.1} parent=1 // pred_check
      _
    $region3: #{tpu_custom_call.1} parent=1 // pred_check_branch
      %20 = sbr.rel (0) target = $region5
    $region4: #{tpu_custom_call.1} parent=1 // pred_region
      _
    $region5: #{tpu_custom_call.1} parent=1 // pred_fallthru
      _
    // Predicated region
    $region6: #{tpu_custom_call.1} parent=1 // pred_check
      _
    $region7: #{tpu_custom_call.1} parent=1 // pred_check_branch
      %22 = sbr.rel (0) target = $region9
    $region8: #{tpu_custom_call.1} parent=1 // pred_region
      _
    $region9: #{tpu_custom_call.1} parent=1 // pred_fallthru
      _
    // Predicated region
    $region10: #{tpu_custom_call.1} parent=1 // pred_check
      _
    $region11: #{tpu_custom_call.1} parent=1 // pred_check_branch
      %24 = sbr.rel (0) target = $region13
    $region12: #{tpu_custom_call.1} parent=1 // pred_region
      _
    $region13: #{tpu_custom_call.1} parent=1 // pred_fallthru
      _
    // Predicated region
    $region14: #{tpu_custom_call.1} parent=1 // pred_check
      _
    $region15: #{tpu_custom_call.1} parent=1 // pred_check_branch
      %26 = sbr.rel (0) target = $region17
    $region16: #{tpu_custom_call.1} parent=1 // pred_region
      _
    $region17: #{tpu_custom_call.1} parent=1 // pred_fallthru
      _
    // Predicated region
    $region18: #{tpu_custom_call.1} parent=1 // pred_check
      _
    $region19: #{tpu_custom_call.1} parent=1 // pred_check_branch
      %28 = sbr.rel (0) target = $region21
    $region20: #{tpu_custom_call.1} parent=1 // pred_region
      _
    $region21: #{tpu_custom_call.1} parent=1 // pred_fallthru
      _
    // Predicated region
    $region22: #{tpu_custom_call.1} parent=1 // pred_check
      _
    $region23: #{tpu_custom_call.1} parent=1 // pred_check_branch
      %30 = sbr.rel (0) target = $region25
    $region24: #{tpu_custom_call.1} parent=1 // pred_region
      _
    $region25: #{tpu_custom_call.1} parent=1 // pred_fallthru
      _
    // Predicated region
    $region26: #{tpu_custom_call.1} parent=1 // pred_check
      _
    $region27: #{tpu_custom_call.1} parent=1 // pred_check_branch
      %32 = sbr.rel (0) target = $region29
    $region28: #{tpu_custom_call.1} parent=1 // pred_region
      _
    $region29: #{tpu_custom_call.1} parent=1 // pred_fallthru
      _
    // Predicated region
    $region30: #{tpu_custom_call.1} parent=1 // pred_check
      _
    $region31: #{tpu_custom_call.1} parent=1 // pred_check_branch
      %34 = sbr.rel (0) target = $region33
    $region32: #{tpu_custom_call.1} parent=1 // pred_region
      _
    $region33: #{tpu_custom_call.1} parent=1 // pred_fallthru
      _
    // Predicated region
    $region34: #{tpu_custom_call.1} parent=1 // pred_check
      _
    $region35: #{tpu_custom_call.1} parent=1 // pred_check_branch
      %36 = sbr.rel (0) target = $region37
    $region36: #{tpu_custom_call.1} parent=1 // pred_region
      _
    $region37: #{tpu_custom_call.1} parent=1 // pred_fallthru
      _
    // Predicated region
    $region38: #{tpu_custom_call.1} parent=1 // pred_check
      _
    $region39: #{tpu_custom_call.1} parent=1 // pred_check_branch
      %38 = sbr.rel (0) target = $region41
    $region40: #{tpu_custom_call.1} parent=1 // pred_region
      _
    $region41: #{tpu_custom_call.1} parent=1 // pred_fallthru
      _
    // Predicated region
    $region42: #{tpu_custom_call.1} parent=1 // pred_check
      _
    $region43: #{tpu_custom_call.1} parent=1 // pred_check_branch
      %40 = sbr.rel (0) target = $region45
    $region44: #{tpu_custom_call.1} parent=1 // pred_region
      _
    $region45: #{tpu_custom_call.1} parent=1 // pred_fallthru
      _
    // Predicated region
    $region46: #{tpu_custom_call.1} parent=1 // pred_check
      _
    $region47: #{tpu_custom_call.1} parent=1 // pred_check_branch
      %42 = sbr.rel (0) target = $region49
    $region48: #{tpu_custom_call.1} parent=1 // pred_region
      _
    $region49: #{tpu_custom_call.1} parent=1 // pred_fallthru
      _
    // Predicated region
    $region50: #{tpu_custom_call.1} parent=1 // pred_check
      _
    $region51: #{tpu_custom_call.1} parent=1 // pred_check_branch
      %44 = sbr.rel (0) target = $region53
    $region52: #{tpu_custom_call.1} parent=1 // pred_region
      _
    $region53: #{tpu_custom_call.1} parent=1 // pred_fallthru
      _
    %v45 = vld [vmem:[%s0] sm:$0xff]
    %v46 = vld [vmem:[%s0 + $0x8] sm:$0xff]
    %v47 = vld [vmem:[%s0 + $0x10] sm:$0xff]
    %v48 = vld [vmem:[%s0 + $0x18] sm:$0xff]
    %v49 = vld [vmem:[%s0 + $0x20] sm:$0xff]
    %v50 = vld [vmem:[%s0 + $0x28] sm:$0xff]
    %v51 = vld [vmem:[%s0 + $0x30] sm:$0xff]
    %v52 = vld [vmem:[%s0 + $0x38] sm:$0xff]
    %v53 = vld [vmem:[%s0 + $0x40] sm:$0xff]
    %v54 = vld [vmem:[%s0 + $0x48] sm:$0xff]
    %v55 = vld [vmem:[%s0 + $0x50] sm:$0xff]
    %v56 = vld [vmem:[%s0 + $0x58] sm:$0xff]
    %v57 = vld [vmem:[%s0 + $0x60] sm:$0xff]
    %v58 = vld [vmem:[%s0 + $0x68] sm:$0xff]
    %v59 = vld [vmem:[%s0 + $0x70] sm:$0xff]
    %v60 = vld [vmem:[%s0 + $0x78] sm:$0xff]
    %v61 = vld [vmem:[%s0 + $0x80] sm:$0xff]
    %v62 = vld [vmem:[%s0 + $0x88] sm:$0xff]
    %v63 = vld [vmem:[%s0 + $0x90] sm:$0xff]
    %v64 = vld [vmem:[%s0 + $0x98] sm:$0xff]
    %v65 = vld [vmem:[%s0 + $0xa0] sm:$0xff]
    %v66 = vld [vmem:[%s0 + $0xa8] sm:$0xff]
    %v67 = vld [vmem:[%s0 + $0xb0] sm:$0xff]
    %v68 = vld [vmem:[%s0 + $0xb8] sm:$0xff]
    %v69 = vld [vmem:[%s0 + $0xc0] sm:$0xff]
    %v70 = vld [vmem:[%s0 + $0xc8] sm:$0xff]
    %v71 = vld [vmem:[%s0 + $0xd0] sm:$0xff]
    %v72 = vld [vmem:[%s0 + $0xd8] sm:$0xff]
    %v73 = vld [vmem:[%s0 + $0xe0] sm:$0xff]
    %v74 = vld [vmem:[%s0 + $0xe8] sm:$0xff]
    %v75 = vld [vmem:[%s0 + $0xf0] sm:$0xff]
    %v76 = vld [vmem:[%s0 + $0xf8] sm:$0xff]
    %v77 = vld [vmem:[%s1] sm:$0xff]
    %v78 = vld [vmem:[%s1 + $0x8] sm:$0xff]
    %v79 = vld [vmem:[%s1 + $0x10] sm:$0xf]
    %v80 = vld [vmem:[%s2] sm:$0x1]
    %v82 = vperm.slane %v80, 0
    %vm84 = vcmask 162816
    %v86 = vsel %vm84, %v45, 0
    %v89 = vsel %vm84, %v46, 0
    %v92 = vsel %vm84, %v47, 0
    %v95 = vsel %vm84, %v48, 0
    %v98 = vsel %vm84, %v49, 0
    %v101 = vsel %vm84, %v50, 0
    %v104 = vsel %vm84, %v51, 0
    %v107 = vsel %vm84, %v52, 0
    %v110 = vsel %vm84, %v53, 0
    %v113 = vsel %vm84, %v54, 0
    %v116 = vsel %vm84, %v55, 0
    %v119 = vsel %vm84, %v56, 0
    %v122 = vsel %vm84, %v57, 0
    %v125 = vsel %vm84, %v58, 0
    %v128 = vsel %vm84, %v59, 0
    %v131 = vsel %vm84, %v60, 0
    %v134 = vsel %vm84, %v61, 0
    %v137 = vsel %vm84, %v62, 0
    %v140 = vsel %vm84, %v63, 0
    %v143 = vsel %vm84, %v64, 0
    %v146 = vsel %vm84, %v65, 0
    %v149 = vsel %vm84, %v66, 0
    %v152 = vsel %vm84, %v67, 0
    %v155 = vsel %vm84, %v68, 0
    %v158 = vsel %vm84, %v69, 0
    %v161 = vsel %vm84, %v70, 0
    %v164 = vsel %vm84, %v71, 0
    %v167 = vsel %vm84, %v72, 0
    %v170 = vsel %vm84, %v73, 0
    %v173 = vsel %vm84, %v74, 0
    %v176 = vsel %vm84, %v75, 0
    %v179 = vsel %vm84, %v76, 0
    %vm181 = vcmask 1043456
    %v183 = vsel %vm181, %v79, 0
    %185 = vmatpush.msra.mxu0 0.0
    %186 = vmatpush.msra.mxu0 0.0
    %187 = vmatpush.msra.mxu0 0.0
    %188 = vmatpush.msra.mxu0 0.0
    %189 = vmatpush.msra.mxu0 0.0
    %190 = vmatpush.msra.mxu0 0.0
    %191 = vmatpush.msra.mxu0 0.0
    %192 = vmatpush.msra.mxu0 0.0
    %193 = vmatpush.msra.mxu0 0.0
    %194 = vmatpush.msra.mxu0 0.0
    %195 = vmatpush.msra.mxu0 0.0
    %196 = vmatpush.msra.mxu0 0.0
    %197 = vmatpush.msra.mxu0 0.0
    %198 = vmatpush.msra.mxu0 %v183
    %199 = vmatpush.msra.mxu0 %v78
    %200 = vmatpush.msra.mxu0 %v77
    %201 = vmatmul.f32.gmra.mxu0 %v86
    %v202 = vpop.f32.mrf.mxu0
    %v203 = vadd.f32 %v82, %v202
    %204 = vmatmul.f32.gmra.mxu0 %v89
    %v205 = vpop.f32.mrf.mxu0
    %v206 = vadd.f32 %v82, %v205
    %207 = vmatmul.f32.gmra.mxu0 %v92
    %v208 = vpop.f32.mrf.mxu0
    %v209 = vadd.f32 %v82, %v208
    %210 = vmatmul.f32.gmra.mxu0 %v95
    %v211 = vpop.f32.mrf.mxu0
    %v212 = vadd.f32 %v82, %v211
    %213 = vmatmul.f32.gmra.mxu0 %v98
    %v214 = vpop.f32.mrf.mxu0
    %v215 = vadd.f32 %v82, %v214
    %216 = vmatmul.f32.gmra.mxu0 %v101
    %v217 = vpop.f32.mrf.mxu0
    %v218 = vadd.f32 %v82, %v217
    %219 = vmatmul.f32.gmra.mxu0 %v104
    %v220 = vpop.f32.mrf.mxu0
    %v221 = vadd.f32 %v82, %v220
    %222 = vmatmul.f32.gmra.mxu0 %v107
    %v223 = vpop.f32.mrf.mxu0
    %v224 = vadd.f32 %v82, %v223
    %225 = vmatmul.f32.gmra.mxu0 %v110
    %v226 = vpop.f32.mrf.mxu0
    %v227 = vadd.f32 %v82, %v226
    %228 = vmatmul.f32.gmra.mxu0 %v113
    %v229 = vpop.f32.mrf.mxu0
    %v230 = vadd.f32 %v82, %v229
    %231 = vmatmul.f32.gmra.mxu0 %v116
    %v232 = vpop.f32.mrf.mxu0
    %v233 = vadd.f32 %v82, %v232
    %234 = vmatmul.f32.gmra.mxu0 %v119
    %v235 = vpop.f32.mrf.mxu0
    %v236 = vadd.f32 %v82, %v235
    %237 = vmatmul.f32.gmra.mxu0 %v122
    %v238 = vpop.f32.mrf.mxu0
    %v239 = vadd.f32 %v82, %v238
    %240 = vmatmul.f32.gmra.mxu0 %v125
    %v241 = vpop.f32.mrf.mxu0
    %v242 = vadd.f32 %v82, %v241
    %243 = vmatmul.f32.gmra.mxu0 %v128
    %v244 = vpop.f32.mrf.mxu0
    %v245 = vadd.f32 %v82, %v244
    %246 = vmatmul.f32.gmra.mxu0 %v131
    %v247 = vpop.f32.mrf.mxu0
    %v248 = vadd.f32 %v82, %v247
    %249 = vmatmul.f32.gmra.mxu0 %v134
    %v250 = vpop.f32.mrf.mxu0
    %v251 = vadd.f32 %v82, %v250
    %252 = vmatmul.f32.gmra.mxu0 %v137
    %v253 = vpop.f32.mrf.mxu0
    %v254 = vadd.f32 %v82, %v253
    %255 = vmatmul.f32.gmra.mxu0 %v140
    %v256 = vpop.f32.mrf.mxu0
    %v257 = vadd.f32 %v82, %v256
    %258 = vmatmul.f32.gmra.mxu0 %v143
    %v259 = vpop.f32.mrf.mxu0
    %v260 = vadd.f32 %v82, %v259
    %261 = vmatmul.f32.gmra.mxu0 %v146
    %v262 = vpop.f32.mrf.mxu0
    %v263 = vadd.f32 %v82, %v262
    %264 = vmatmul.f32.gmra.mxu0 %v149
    %v265 = vpop.f32.mrf.mxu0
    %v266 = vadd.f32 %v82, %v265
    %267 = vmatmul.f32.gmra.mxu0 %v152
    %v268 = vpop.f32.mrf.mxu0
    %v269 = vadd.f32 %v82, %v268
    %270 = vmatmul.f32.gmra.mxu0 %v155
    %v271 = vpop.f32.mrf.mxu0
    %v272 = vadd.f32 %v82, %v271
    %273 = vmatmul.f32.gmra.mxu0 %v158
    %v274 = vpop.f32.mrf.mxu0
    %v275 = vadd.f32 %v82, %v274
    %276 = vmatmul.f32.gmra.mxu0 %v161
    %v277 = vpop.f32.mrf.mxu0
    %v278 = vadd.f32 %v82, %v277
    %279 = vmatmul.f32.gmra.mxu0 %v164
    %v280 = vpop.f32.mrf.mxu0
    %v281 = vadd.f32 %v82, %v280
    %282 = vmatmul.f32.gmra.mxu0 %v167
    %v283 = vpop.f32.mrf.mxu0
    %v284 = vadd.f32 %v82, %v283
    %285 = vmatmul.f32.gmra.mxu0 %v170
    %v286 = vpop.f32.mrf.mxu0
    %v287 = vadd.f32 %v82, %v286
    %288 = vmatmul.f32.gmra.mxu0 %v173
    %v289 = vpop.f32.mrf.mxu0
    %v290 = vadd.f32 %v82, %v289
    %291 = vmatmul.f32.gmra.mxu0 %v176
    %v292 = vpop.f32.mrf.mxu0
    %v293 = vadd.f32 %v82, %v292
    %294 = vmatmul.f32.gmra.mxu0 %v179
    %v295 = vpop.f32.mrf.mxu0
    %v296 = vadd.f32 %v82, %v295
    %297 = vdwg.mxu0
    %vm298 = vcmp.ge.f32.partialorder %v203, 0.0
    %vm299 = vcmp.ge.f32.partialorder %v206, 0.0
    %vm300 = vcmp.ge.f32.partialorder %v209, 0.0
    %vm301 = vcmp.ge.f32.partialorder %v212, 0.0
    %vm302 = vcmp.ge.f32.partialorder %v215, 0.0
    %vm303 = vcmp.ge.f32.partialorder %v218, 0.0
    %vm304 = vcmp.ge.f32.partialorder %v221, 0.0
    %vm305 = vcmp.ge.f32.partialorder %v224, 0.0
    %vm306 = vcmp.ge.f32.partialorder %v227, 0.0
    %vm307 = vcmp.ge.f32.partialorder %v230, 0.0
    %vm308 = vcmp.ge.f32.partialorder %v233, 0.0
    %vm309 = vcmp.ge.f32.partialorder %v236, 0.0
    %vm310 = vcmp.ge.f32.partialorder %v239, 0.0
    %vm311 = vcmp.ge.f32.partialorder %v242, 0.0
    %vm312 = vcmp.ge.f32.partialorder %v245, 0.0
    %vm313 = vcmp.ge.f32.partialorder %v248, 0.0
    %vm314 = vcmp.ge.f32.partialorder %v251, 0.0
    %vm315 = vcmp.ge.f32.partialorder %v254, 0.0
    %vm316 = vcmp.ge.f32.partialorder %v257, 0.0
    %vm317 = vcmp.ge.f32.partialorder %v260, 0.0
    %vm318 = vcmp.ge.f32.partialorder %v263, 0.0
    %vm319 = vcmp.ge.f32.partialorder %v266, 0.0
    %vm320 = vcmp.ge.f32.partialorder %v269, 0.0
    %vm321 = vcmp.ge.f32.partialorder %v272, 0.0
    %vm322 = vcmp.ge.f32.partialorder %v275, 0.0
    %vm323 = vcmp.ge.f32.partialorder %v278, 0.0
    %vm324 = vcmp.ge.f32.partialorder %v281, 0.0
    %vm325 = vcmp.ge.f32.partialorder %v284, 0.0
    %vm326 = vcmp.ge.f32.partialorder %v287, 0.0
    %vm327 = vcmp.ge.f32.partialorder %v290, 0.0
    %vm328 = vcmp.ge.f32.partialorder %v293, 0.0
    %vm329 = vcmp.ge.f32.partialorder %v296, 0.0
    %v330 = vmul.f32 %v203, 0.01
    %v331 = vmul.f32 %v206, 0.01
    %v332 = vmul.f32 %v209, 0.01
    %v333 = vmul.f32 %v212, 0.01
    %v334 = vmul.f32 %v215, 0.01
    %v335 = vmul.f32 %v218, 0.01
    %v336 = vmul.f32 %v221, 0.01
    %v337 = vmul.f32 %v224, 0.01
    %v338 = vmul.f32 %v227, 0.01
    %v339 = vmul.f32 %v230, 0.01
    %v340 = vmul.f32 %v233, 0.01
    %v341 = vmul.f32 %v236, 0.01
    %v342 = vmul.f32 %v239, 0.01
    %v343 = vmul.f32 %v242, 0.01
    %v344 = vmul.f32 %v245, 0.01
    %v345 = vmul.f32 %v248, 0.01
    %v346 = vmul.f32 %v251, 0.01
    %v347 = vmul.f32 %v254, 0.01
    %v348 = vmul.f32 %v257, 0.01
    %v349 = vmul.f32 %v260, 0.01
    %v350 = vmul.f32 %v263, 0.01
    %v351 = vmul.f32 %v266, 0.01
    %v352 = vmul.f32 %v269, 0.01
    %v353 = vmul.f32 %v272, 0.01
    %v354 = vmul.f32 %v275, 0.01
    %v355 = vmul.f32 %v278, 0.01
    %v356 = vmul.f32 %v281, 0.01
    %v357 = vmul.f32 %v284, 0.01
    %v358 = vmul.f32 %v287, 0.01
    %v359 = vmul.f32 %v290, 0.01
    %v360 = vmul.f32 %v293, 0.01
    %v361 = vmul.f32 %v296, 0.01
    %v362 = vsel %vm298, %v203, %v330
    %v363 = vsel %vm299, %v206, %v331
    %v364 = vsel %vm300, %v209, %v332
    %v365 = vsel %vm301, %v212, %v333
    %v366 = vsel %vm302, %v215, %v334
    %v367 = vsel %vm303, %v218, %v335
    %v368 = vsel %vm304, %v221, %v336
    %v369 = vsel %vm305, %v224, %v337
    %v370 = vsel %vm306, %v227, %v338
    %v371 = vsel %vm307, %v230, %v339
    %v372 = vsel %vm308, %v233, %v340
    %v373 = vsel %vm309, %v236, %v341
    %v374 = vsel %vm310, %v239, %v342
    %v375 = vsel %vm311, %v242, %v343
    %v376 = vsel %vm312, %v245, %v344
    %v377 = vsel %vm313, %v248, %v345
    %v378 = vsel %vm314, %v251, %v346
    %v379 = vsel %vm315, %v254, %v347
    %v380 = vsel %vm316, %v257, %v348
    %v381 = vsel %vm317, %v260, %v349
    %v382 = vsel %vm318, %v263, %v350
    %v383 = vsel %vm319, %v266, %v351
    %v384 = vsel %vm320, %v269, %v352
    %v385 = vsel %vm321, %v272, %v353
    %v386 = vsel %vm322, %v275, %v354
    %v387 = vsel %vm323, %v278, %v355
    %v388 = vsel %vm324, %v281, %v356
    %v389 = vsel %vm325, %v284, %v357
    %v390 = vsel %vm326, %v287, %v358
    %v391 = vsel %vm327, %v290, %v359
    %v392 = vsel %vm328, %v293, %v360
    %v393 = vsel %vm329, %v296, %v361
    %v394 = vld [vmem:[%s3] sm:$0xff]
    %v395 = vld [vmem:[%s3 + $0x8] sm:$0xff]
    %v396 = vld [vmem:[%s3 + $0x10] sm:$0xff]
    %v397 = vld [vmem:[%s3 + $0x18] sm:$0xff]
    %v398 = vld [vmem:[%s3 + $0x20] sm:$0xff]
    %v399 = vld [vmem:[%s3 + $0x28] sm:$0xff]
    %v400 = vld [vmem:[%s3 + $0x30] sm:$0xff]
    %v401 = vld [vmem:[%s3 + $0x38] sm:$0xff]
    %v402 = vld [vmem:[%s3 + $0x40] sm:$0xff]
    %v403 = vld [vmem:[%s3 + $0x48] sm:$0xff]
    %v404 = vld [vmem:[%s3 + $0x50] sm:$0xff]
    %v405 = vld [vmem:[%s3 + $0x58] sm:$0xff]
    %v406 = vld [vmem:[%s3 + $0x60] sm:$0xff]
    %v407 = vld [vmem:[%s3 + $0x68] sm:$0xff]
    %v408 = vld [vmem:[%s3 + $0x70] sm:$0xff]
    %v409 = vld [vmem:[%s3 + $0x78] sm:$0xff]
    %v410 = vld [vmem:[%s4] sm:$0x1]
    %v412 = vperm.slane %v410, 0
    %414 = vmatpush.msra.mxu0 %v409
    %415 = vmatpush.msra.mxu0 %v408
    %416 = vmatpush.msra.mxu0 %v407
    %417 = vmatpush.msra.mxu0 %v406
    %418 = vmatpush.msra.mxu0 %v405
    %419 = vmatpush.msra.mxu0 %v404
    %420 = vmatpush.msra.mxu0 %v403
    %421 = vmatpush.msra.mxu0 %v402
    %422 = vmatpush.msra.mxu0 %v401
    %423 = vmatpush.msra.mxu0 %v400
    %424 = vmatpush.msra.mxu0 %v399
    %425 = vmatpush.msra.mxu0 %v398
    %426 = vmatpush.msra.mxu0 %v397
    %427 = vmatpush.msra.mxu0 %v396
    %428 = vmatpush.msra.mxu0 %v395
    %429 = vmatpush.msra.mxu0 %v394
    %430 = vmatmul.f32.gmra.mxu0 %v362
    %v431 = vpop.f32.mrf.mxu0
    %v432 = vadd.f32 %v412, %v431
    %433 = vmatmul.f32.gmra.mxu0 %v363
    %v434 = vpop.f32.mrf.mxu0
    %v435 = vadd.f32 %v412, %v434
    %436 = vmatmul.f32.gmra.mxu0 %v364
    %v437 = vpop.f32.mrf.mxu0
    %v438 = vadd.f32 %v412, %v437
    %439 = vmatmul.f32.gmra.mxu0 %v365
    %v440 = vpop.f32.mrf.mxu0
    %v441 = vadd.f32 %v412, %v440
    %442 = vmatmul.f32.gmra.mxu0 %v366
    %v443 = vpop.f32.mrf.mxu0
    %v444 = vadd.f32 %v412, %v443
    %445 = vmatmul.f32.gmra.mxu0 %v367
    %v446 = vpop.f32.mrf.mxu0
    %v447 = vadd.f32 %v412, %v446
    %448 = vmatmul.f32.gmra.mxu0 %v368
    %v449 = vpop.f32.mrf.mxu0
    %v450 = vadd.f32 %v412, %v449
    %451 = vmatmul.f32.gmra.mxu0 %v369
    %v452 = vpop.f32.mrf.mxu0
    %v453 = vadd.f32 %v412, %v452
    %454 = vmatmul.f32.gmra.mxu0 %v370
    %v455 = vpop.f32.mrf.mxu0
    %v456 = vadd.f32 %v412, %v455
    %457 = vmatmul.f32.gmra.mxu0 %v371
    %v458 = vpop.f32.mrf.mxu0
    %v459 = vadd.f32 %v412, %v458
    %460 = vmatmul.f32.gmra.mxu0 %v372
    %v461 = vpop.f32.mrf.mxu0
    %v462 = vadd.f32 %v412, %v461
    %463 = vmatmul.f32.gmra.mxu0 %v373
    %v464 = vpop.f32.mrf.mxu0
    %v465 = vadd.f32 %v412, %v464
    %466 = vmatmul.f32.gmra.mxu0 %v374
    %v467 = vpop.f32.mrf.mxu0
    %v468 = vadd.f32 %v412, %v467
    %469 = vmatmul.f32.gmra.mxu0 %v375
    %v470 = vpop.f32.mrf.mxu0
    %v471 = vadd.f32 %v412, %v470
    %472 = vmatmul.f32.gmra.mxu0 %v376
    %v473 = vpop.f32.mrf.mxu0
    %v474 = vadd.f32 %v412, %v473
    %475 = vmatmul.f32.gmra.mxu0 %v377
    %v476 = vpop.f32.mrf.mxu0
    %v477 = vadd.f32 %v412, %v476
    %478 = vmatmul.f32.gmra.mxu0 %v378
    %v479 = vpop.f32.mrf.mxu0
    %v480 = vadd.f32 %v412, %v479
    %481 = vmatmul.f32.gmra.mxu0 %v379
    %v482 = vpop.f32.mrf.mxu0
    %v483 = vadd.f32 %v412, %v482
    %484 = vmatmul.f32.gmra.mxu0 %v380
    %v485 = vpop.f32.mrf.mxu0
    %v486 = vadd.f32 %v412, %v485
    %487 = vmatmul.f32.gmra.mxu0 %v381
    %v488 = vpop.f32.mrf.mxu0
    %v489 = vadd.f32 %v412, %v488
    %490 = vmatmul.f32.gmra.mxu0 %v382
    %v491 = vpop.f32.mrf.mxu0
    %v492 = vadd.f32 %v412, %v491
    %493 = vmatmul.f32.gmra.mxu0 %v383
    %v494 = vpop.f32.mrf.mxu0
    %v495 = vadd.f32 %v412, %v494
    %496 = vmatmul.f32.gmra.mxu0 %v384
    %v497 = vpop.f32.mrf.mxu0
    %v498 = vadd.f32 %v412, %v497
    %499 = vmatmul.f32.gmra.mxu0 %v385
    %v500 = vpop.f32.mrf.mxu0
    %v501 = vadd.f32 %v412, %v500
    %502 = vmatmul.f32.gmra.mxu0 %v386
    %v503 = vpop.f32.mrf.mxu0
    %v504 = vadd.f32 %v412, %v503
    %505 = vmatmul.f32.gmra.mxu0 %v387
    %v506 = vpop.f32.mrf.mxu0
    %v507 = vadd.f32 %v412, %v506
    %508 = vmatmul.f32.gmra.mxu0 %v388
    %v509 = vpop.f32.mrf.mxu0
    %v510 = vadd.f32 %v412, %v509
    %511 = vmatmul.f32.gmra.mxu0 %v389
    %v512 = vpop.f32.mrf.mxu0
    %v513 = vadd.f32 %v412, %v512
    %514 = vmatmul.f32.gmra.mxu0 %v390
    %v515 = vpop.f32.mrf.mxu0
    %v516 = vadd.f32 %v412, %v515
    %517 = vmatmul.f32.gmra.mxu0 %v391
    %v518 = vpop.f32.mrf.mxu0
    %v519 = vadd.f32 %v412, %v518
    %520 = vmatmul.f32.gmra.mxu0 %v392
    %v521 = vpop.f32.mrf.mxu0
    %v522 = vadd.f32 %v412, %v521
    %523 = vmatmul.f32.gmra.mxu0 %v393
    %v524 = vpop.f32.mrf.mxu0
    %v525 = vadd.f32 %v412, %v524
    %526 = vdwg.mxu0
    %vm527 = vcmp.ge.f32.partialorder %v432, 0.0
    %vm528 = vcmp.ge.f32.partialorder %v435, 0.0
    %vm529 = vcmp.ge.f32.partialorder %v438, 0.0
    %vm530 = vcmp.ge.f32.partialorder %v441, 0.0
    %vm531 = vcmp.ge.f32.partialorder %v444, 0.0
    %vm532 = vcmp.ge.f32.partialorder %v447, 0.0
    %vm533 = vcmp.ge.f32.partialorder %v450, 0.0
    %vm534 = vcmp.ge.f32.partialorder %v453, 0.0
    %vm535 = vcmp.ge.f32.partialorder %v456, 0.0
    %vm536 = vcmp.ge.f32.partialorder %v459, 0.0
    %vm537 = vcmp.ge.f32.partialorder %v462, 0.0
    %vm538 = vcmp.ge.f32.partialorder %v465, 0.0
    %vm539 = vcmp.ge.f32.partialorder %v468, 0.0
    %vm540 = vcmp.ge.f32.partialorder %v471, 0.0
    %vm541 = vcmp.ge.f32.partialorder %v474, 0.0
    %vm542 = vcmp.ge.f32.partialorder %v477, 0.0
    %vm543 = vcmp.ge.f32.partialorder %v480, 0.0
    %vm544 = vcmp.ge.f32.partialorder %v483, 0.0
    %vm545 = vcmp.ge.f32.partialorder %v486, 0.0
    %vm546 = vcmp.ge.f32.partialorder %v489, 0.0
    %vm547 = vcmp.ge.f32.partialorder %v492, 0.0
    %vm548 = vcmp.ge.f32.partialorder %v495, 0.0
    %vm549 = vcmp.ge.f32.partialorder %v498, 0.0
    %vm550 = vcmp.ge.f32.partialorder %v501, 0.0
    %vm551 = vcmp.ge.f32.partialorder %v504, 0.0
    %vm552 = vcmp.ge.f32.partialorder %v507, 0.0
    %vm553 = vcmp.ge.f32.partialorder %v510, 0.0
    %vm554 = vcmp.ge.f32.partialorder %v513, 0.0
    %vm555 = vcmp.ge.f32.partialorder %v516, 0.0
    %vm556 = vcmp.ge.f32.partialorder %v519, 0.0
    %vm557 = vcmp.ge.f32.partialorder %v522, 0.0
    %vm558 = vcmp.ge.f32.partialorder %v525, 0.0
    %v559 = vmul.f32 %v432, 0.01
    %v560 = vmul.f32 %v435, 0.01
    %v561 = vmul.f32 %v438, 0.01
    %v562 = vmul.f32 %v441, 0.01
    %v563 = vmul.f32 %v444, 0.01
    %v564 = vmul.f32 %v447, 0.01
    %v565 = vmul.f32 %v450, 0.01
    %v566 = vmul.f32 %v453, 0.01
    %v567 = vmul.f32 %v456, 0.01
    %v568 = vmul.f32 %v459, 0.01
    %v569 = vmul.f32 %v462, 0.01
    %v570 = vmul.f32 %v465, 0.01
    %v571 = vmul.f32 %v468, 0.01
    %v572 = vmul.f32 %v471, 0.01
    %v573 = vmul.f32 %v474, 0.01
    %v574 = vmul.f32 %v477, 0.01
    %v575 = vmul.f32 %v480, 0.01
    %v576 = vmul.f32 %v483, 0.01
    %v577 = vmul.f32 %v486, 0.01
    %v578 = vmul.f32 %v489, 0.01
    %v579 = vmul.f32 %v492, 0.01
    %v580 = vmul.f32 %v495, 0.01
    %v581 = vmul.f32 %v498, 0.01
    %v582 = vmul.f32 %v501, 0.01
    %v583 = vmul.f32 %v504, 0.01
    %v584 = vmul.f32 %v507, 0.01
    %v585 = vmul.f32 %v510, 0.01
    %v586 = vmul.f32 %v513, 0.01
    %v587 = vmul.f32 %v516, 0.01
    %v588 = vmul.f32 %v519, 0.01
    %v589 = vmul.f32 %v522, 0.01
    %v590 = vmul.f32 %v525, 0.01
    %v591 = vsel %vm527, %v432, %v559
    %v592 = vsel %vm528, %v435, %v560
    %v593 = vsel %vm529, %v438, %v561
    %v594 = vsel %vm530, %v441, %v562
    %v595 = vsel %vm531, %v444, %v563
    %v596 = vsel %vm532, %v447, %v564
    %v597 = vsel %vm533, %v450, %v565
    %v598 = vsel %vm534, %v453, %v566
    %v599 = vsel %vm535, %v456, %v567
    %v600 = vsel %vm536, %v459, %v568
    %v601 = vsel %vm537, %v462, %v569
    %v602 = vsel %vm538, %v465, %v570
    %v603 = vsel %vm539, %v468, %v571
    %v604 = vsel %vm540, %v471, %v572
    %v605 = vsel %vm541, %v474, %v573
    %v606 = vsel %vm542, %v477, %v574
    %v607 = vsel %vm543, %v480, %v575
    %v608 = vsel %vm544, %v483, %v576
    %v609 = vsel %vm545, %v486, %v577
    %v610 = vsel %vm546, %v489, %v578
    %v611 = vsel %vm547, %v492, %v579
    %v612 = vsel %vm548, %v495, %v580
    %v613 = vsel %vm549, %v498, %v581
    %v614 = vsel %vm550, %v501, %v582
    %v615 = vsel %vm551, %v504, %v583
    %v616 = vsel %vm552, %v507, %v584
    %v617 = vsel %vm553, %v510, %v585
    %v618 = vsel %vm554, %v513, %v586
    %v619 = vsel %vm555, %v516, %v587
    %v620 = vsel %vm556, %v519, %v588
    %v621 = vsel %vm557, %v522, %v589
    %v622 = vsel %vm558, %v525, %v590
    %v623 = vld [vmem:[%s5] sm:$0xff]
    %v624 = vld [vmem:[%s5 + $0x8] sm:$0xff]
    %v625 = vld [vmem:[%s6] sm:$0x1]
    %v627 = vperm.slane %v625, 0
    %vm629 = vcmask 130048
    %v631 = vsel %vm629, %v591, 0
    %v634 = vsel %vm629, %v592, 0
    %v637 = vsel %vm629, %v593, 0
    %v640 = vsel %vm629, %v594, 0
    %v643 = vsel %vm629, %v595, 0
    %v646 = vsel %vm629, %v596, 0
    %v649 = vsel %vm629, %v597, 0
    %v652 = vsel %vm629, %v598, 0
    %v655 = vsel %vm629, %v599, 0
    %v658 = vsel %vm629, %v600, 0
    %v661 = vsel %vm629, %v601, 0
    %v664 = vsel %vm629, %v602, 0
    %v667 = vsel %vm629, %v603, 0
    %v670 = vsel %vm629, %v604, 0
    %v673 = vsel %vm629, %v605, 0
    %v676 = vsel %vm629, %v606, 0
    %v679 = vsel %vm629, %v607, 0
    %v682 = vsel %vm629, %v608, 0
    %v685 = vsel %vm629, %v609, 0
    %v688 = vsel %vm629, %v610, 0
    %v691 = vsel %vm629, %v611, 0
    %v694 = vsel %vm629, %v612, 0
    %v697 = vsel %vm629, %v613, 0
    %v700 = vsel %vm629, %v614, 0
    %v703 = vsel %vm629, %v615, 0
    %v706 = vsel %vm629, %v616, 0
    %v709 = vsel %vm629, %v617, 0
    %v712 = vsel %vm629, %v618, 0
    %v715 = vsel %vm629, %v619, 0
    %v718 = vsel %vm629, %v620, 0
    %v721 = vsel %vm629, %v621, 0
    %v724 = vsel %vm629, %v622, 0
    %726 = vmatpush.msra.mxu0 0.0
    %727 = vmatpush.msra.mxu0 0.0
    %728 = vmatpush.msra.mxu0 0.0
    %729 = vmatpush.msra.mxu0 0.0
    %730 = vmatpush.msra.mxu0 0.0
    %731 = vmatpush.msra.mxu0 0.0
    %732 = vmatpush.msra.mxu0 0.0
    %733 = vmatpush.msra.mxu0 0.0
    %734 = vmatpush.msra.mxu0 0.0
    %735 = vmatpush.msra.mxu0 0.0
    %736 = vmatpush.msra.mxu0 0.0
    %737 = vmatpush.msra.mxu0 0.0
    %738 = vmatpush.msra.mxu0 0.0
    %739 = vmatpush.msra.mxu0 0.0
    %740 = vmatpush.msra.mxu0 %v624
    %741 = vmatpush.msra.mxu0 %v623
    %742 = vmatmul.f32.gmra.mxu0 %v631
    %v743 = vpop.f32.mrf.mxu0
    %v744 = vadd.f32 %v627, %v743
    %745 = vmatmul.f32.gmra.mxu0 %v634
    %v746 = vpop.f32.mrf.mxu0
    %v747 = vadd.f32 %v627, %v746
    %748 = vmatmul.f32.gmra.mxu0 %v637
    %v749 = vpop.f32.mrf.mxu0
    %v750 = vadd.f32 %v627, %v749
    %751 = vmatmul.f32.gmra.mxu0 %v640
    %v752 = vpop.f32.mrf.mxu0
    %v753 = vadd.f32 %v627, %v752
    %754 = vmatmul.f32.gmra.mxu0 %v643
    %v755 = vpop.f32.mrf.mxu0
    %v756 = vadd.f32 %v627, %v755
    %757 = vmatmul.f32.gmra.mxu0 %v646
    %v758 = vpop.f32.mrf.mxu0
    %v759 = vadd.f32 %v627, %v758
    %760 = vmatmul.f32.gmra.mxu0 %v649
    %v761 = vpop.f32.mrf.mxu0
    %v762 = vadd.f32 %v627, %v761
    %763 = vmatmul.f32.gmra.mxu0 %v652
    %v764 = vpop.f32.mrf.mxu0
    %v765 = vadd.f32 %v627, %v764
    %766 = vmatmul.f32.gmra.mxu0 %v655
    %v767 = vpop.f32.mrf.mxu0
    %v768 = vadd.f32 %v627, %v767
    %769 = vmatmul.f32.gmra.mxu0 %v658
    %v770 = vpop.f32.mrf.mxu0
    %v771 = vadd.f32 %v627, %v770
    %772 = vmatmul.f32.gmra.mxu0 %v661
    %v773 = vpop.f32.mrf.mxu0
    %v774 = vadd.f32 %v627, %v773
    %775 = vmatmul.f32.gmra.mxu0 %v664
    %v776 = vpop.f32.mrf.mxu0
    %v777 = vadd.f32 %v627, %v776
    %778 = vmatmul.f32.gmra.mxu0 %v667
    %v779 = vpop.f32.mrf.mxu0
    %v780 = vadd.f32 %v627, %v779
    %781 = vmatmul.f32.gmra.mxu0 %v670
    %v782 = vpop.f32.mrf.mxu0
    %v783 = vadd.f32 %v627, %v782
    %784 = vmatmul.f32.gmra.mxu0 %v673
    %v785 = vpop.f32.mrf.mxu0
    %v786 = vadd.f32 %v627, %v785
    %787 = vmatmul.f32.gmra.mxu0 %v676
    %v788 = vpop.f32.mrf.mxu0
    %v789 = vadd.f32 %v627, %v788
    %790 = vmatmul.f32.gmra.mxu0 %v679
    %v791 = vpop.f32.mrf.mxu0
    %v792 = vadd.f32 %v627, %v791
    %793 = vmatmul.f32.gmra.mxu0 %v682
    %v794 = vpop.f32.mrf.mxu0
    %v795 = vadd.f32 %v627, %v794
    %796 = vmatmul.f32.gmra.mxu0 %v685
    %v797 = vpop.f32.mrf.mxu0
    %v798 = vadd.f32 %v627, %v797
    %799 = vmatmul.f32.gmra.mxu0 %v688
    %v800 = vpop.f32.mrf.mxu0
    %v801 = vadd.f32 %v627, %v800
    %802 = vmatmul.f32.gmra.mxu0 %v691
    %v803 = vpop.f32.mrf.mxu0
    %v804 = vadd.f32 %v627, %v803
    %805 = vmatmul.f32.gmra.mxu0 %v694
    %v806 = vpop.f32.mrf.mxu0
    %v807 = vadd.f32 %v627, %v806
    %808 = vmatmul.f32.gmra.mxu0 %v697
    %v809 = vpop.f32.mrf.mxu0
    %v810 = vadd.f32 %v627, %v809
    %811 = vmatmul.f32.gmra.mxu0 %v700
    %v812 = vpop.f32.mrf.mxu0
    %v813 = vadd.f32 %v627, %v812
    %814 = vmatmul.f32.gmra.mxu0 %v703
    %v815 = vpop.f32.mrf.mxu0
    %v816 = vadd.f32 %v627, %v815
    %817 = vmatmul.f32.gmra.mxu0 %v706
    %v818 = vpop.f32.mrf.mxu0
    %v819 = vadd.f32 %v627, %v818
    %820 = vmatmul.f32.gmra.mxu0 %v709
    %v821 = vpop.f32.mrf.mxu0
    %v822 = vadd.f32 %v627, %v821
    %823 = vmatmul.f32.gmra.mxu0 %v712
    %v824 = vpop.f32.mrf.mxu0
    %v825 = vadd.f32 %v627, %v824
    %826 = vmatmul.f32.gmra.mxu0 %v715
    %v827 = vpop.f32.mrf.mxu0
    %v828 = vadd.f32 %v627, %v827
    %829 = vmatmul.f32.gmra.mxu0 %v718
    %v830 = vpop.f32.mrf.mxu0
    %v831 = vadd.f32 %v627, %v830
    %832 = vmatmul.f32.gmra.mxu0 %v721
    %v833 = vpop.f32.mrf.mxu0
    %v834 = vadd.f32 %v627, %v833
    %835 = vmatmul.f32.gmra.mxu0 %v724
    %v836 = vpop.f32.mrf.mxu0
    %v837 = vadd.f32 %v627, %v836
    %838 = vdwg.mxu0
    %vm839 = vcmp.ge.f32.partialorder %v744, 0.0
    %vm840 = vcmp.ge.f32.partialorder %v747, 0.0
    %vm841 = vcmp.ge.f32.partialorder %v750, 0.0
    %vm842 = vcmp.ge.f32.partialorder %v753, 0.0
    %vm843 = vcmp.ge.f32.partialorder %v756, 0.0
    %vm844 = vcmp.ge.f32.partialorder %v759, 0.0
    %vm845 = vcmp.ge.f32.partialorder %v762, 0.0
    %vm846 = vcmp.ge.f32.partialorder %v765, 0.0
    %vm847 = vcmp.ge.f32.partialorder %v768, 0.0
    %vm848 = vcmp.ge.f32.partialorder %v771, 0.0
    %vm849 = vcmp.ge.f32.partialorder %v774, 0.0
    %vm850 = vcmp.ge.f32.partialorder %v777, 0.0
    %vm851 = vcmp.ge.f32.partialorder %v780, 0.0
    %vm852 = vcmp.ge.f32.partialorder %v783, 0.0
    %vm853 = vcmp.ge.f32.partialorder %v786, 0.0
    %vm854 = vcmp.ge.f32.partialorder %v789, 0.0
    %vm855 = vcmp.ge.f32.partialorder %v792, 0.0
    %vm856 = vcmp.ge.f32.partialorder %v795, 0.0
    %vm857 = vcmp.ge.f32.partialorder %v798, 0.0
    %vm858 = vcmp.ge.f32.partialorder %v801, 0.0
    %vm859 = vcmp.ge.f32.partialorder %v804, 0.0
    %vm860 = vcmp.ge.f32.partialorder %v807, 0.0
    %vm861 = vcmp.ge.f32.partialorder %v810, 0.0
    %vm862 = vcmp.ge.f32.partialorder %v813, 0.0
    %vm863 = vcmp.ge.f32.partialorder %v816, 0.0
    %vm864 = vcmp.ge.f32.partialorder %v819, 0.0
    %vm865 = vcmp.ge.f32.partialorder %v822, 0.0
    %vm866 = vcmp.ge.f32.partialorder %v825, 0.0
    %vm867 = vcmp.ge.f32.partialorder %v828, 0.0
    %vm868 = vcmp.ge.f32.partialorder %v831, 0.0
    %vm869 = vcmp.ge.f32.partialorder %v834, 0.0
    %vm870 = vcmp.ge.f32.partialorder %v837, 0.0
    %v871 = vmul.f32 %v744, 0.01
    %v872 = vmul.f32 %v747, 0.01
    %v873 = vmul.f32 %v750, 0.01
    %v874 = vmul.f32 %v753, 0.01
    %v875 = vmul.f32 %v756, 0.01
    %v876 = vmul.f32 %v759, 0.01
    %v877 = vmul.f32 %v762, 0.01
    %v878 = vmul.f32 %v765, 0.01
    %v879 = vmul.f32 %v768, 0.01
    %v880 = vmul.f32 %v771, 0.01
    %v881 = vmul.f32 %v774, 0.01
    %v882 = vmul.f32 %v777, 0.01
    %v883 = vmul.f32 %v780, 0.01
    %v884 = vmul.f32 %v783, 0.01
    %v885 = vmul.f32 %v786, 0.01
    %v886 = vmul.f32 %v789, 0.01
    %v887 = vmul.f32 %v792, 0.01
    %v888 = vmul.f32 %v795, 0.01
    %v889 = vmul.f32 %v798, 0.01
    %v890 = vmul.f32 %v801, 0.01
    %v891 = vmul.f32 %v804, 0.01
    %v892 = vmul.f32 %v807, 0.01
    %v893 = vmul.f32 %v810, 0.01
    %v894 = vmul.f32 %v813, 0.01
    %v895 = vmul.f32 %v816, 0.01
    %v896 = vmul.f32 %v819, 0.01
    %v897 = vmul.f32 %v822, 0.01
    %v898 = vmul.f32 %v825, 0.01
    %v899 = vmul.f32 %v828, 0.01
    %v900 = vmul.f32 %v831, 0.01
    %v901 = vmul.f32 %v834, 0.01
    %v902 = vmul.f32 %v837, 0.01
    %v903 = vsel %vm839, %v744, %v871
    %v904 = vsel %vm840, %v747, %v872
    %v905 = vsel %vm841, %v750, %v873
    %v906 = vsel %vm842, %v753, %v874
    %v907 = vsel %vm843, %v756, %v875
    %v908 = vsel %vm844, %v759, %v876
    %v909 = vsel %vm845, %v762, %v877
    %v910 = vsel %vm846, %v765, %v878
    %v911 = vsel %vm847, %v768, %v879
    %v912 = vsel %vm848, %v771, %v880
    %v913 = vsel %vm849, %v774, %v881
    %v914 = vsel %vm850, %v777, %v882
    %v915 = vsel %vm851, %v780, %v883
    %v916 = vsel %vm852, %v783, %v884
    %v917 = vsel %vm853, %v786, %v885
    %v918 = vsel %vm854, %v789, %v886
    %v919 = vsel %vm855, %v792, %v887
    %v920 = vsel %vm856, %v795, %v888
    %v921 = vsel %vm857, %v798, %v889
    %v922 = vsel %vm858, %v801, %v890
    %v923 = vsel %vm859, %v804, %v891
    %v924 = vsel %vm860, %v807, %v892
    %v925 = vsel %vm861, %v810, %v893
    %v926 = vsel %vm862, %v813, %v894
    %v927 = vsel %vm863, %v816, %v895
    %v928 = vsel %vm864, %v819, %v896
    %v929 = vsel %vm865, %v822, %v897
    %v930 = vsel %vm866, %v825, %v898
    %v931 = vsel %vm867, %v828, %v899
    %v932 = vsel %vm868, %v831, %v900
    %v933 = vsel %vm869, %v834, %v901
    %v934 = vsel %vm870, %v837, %v902
    %v935 = vld [vmem:[%s7] sm:$0xff]
    %v936 = vld [vmem:[%s7 + $0x8] sm:$0xff]
    %v937 = vld [vmem:[%s7 + $0x10] sm:$0xff]
    %v938 = vld [vmem:[%s7 + $0x18] sm:$0xff]
    %v939 = vld [vmem:[%s7 + $0x20] sm:$0xff]
    %v940 = vld [vmem:[%s7 + $0x28] sm:$0xff]
    %v941 = vld [vmem:[%s7 + $0x30] sm:$0xff]
    %v942 = vld [vmem:[%s7 + $0x38] sm:$0xff]
    %v943 = vld [vmem:[%s7 + $0x40] sm:$0xff]
    %v944 = vld [vmem:[%s7 + $0x48] sm:$0xff]
    %v945 = vld [vmem:[%s7 + $0x50] sm:$0xff]
    %v946 = vld [vmem:[%s7 + $0x58] sm:$0xff]
    %v947 = vld [vmem:[%s7 + $0x60] sm:$0xff]
    %v948 = vld [vmem:[%s7 + $0x68] sm:$0xff]
    %v949 = vld [vmem:[%s7 + $0x70] sm:$0xff]
    %v950 = vld [vmem:[%s7 + $0x78] sm:$0xff]
    %v951 = vld [vmem:[%s8] sm:$0x1]
    %v953 = vperm.slane %v951, 0
    %955 = vmatpush.msra.mxu0 %v950
    %956 = vmatpush.msra.mxu0 %v949
    %957 = vmatpush.msra.mxu0 %v948
    %958 = vmatpush.msra.mxu0 %v947
    %959 = vmatpush.msra.mxu0 %v946
    %960 = vmatpush.msra.mxu0 %v945
    %961 = vmatpush.msra.mxu0 %v944
    %962 = vmatpush.msra.mxu0 %v943
    %963 = vmatpush.msra.mxu0 %v942
    %964 = vmatpush.msra.mxu0 %v941
    %965 = vmatpush.msra.mxu0 %v940
    %966 = vmatpush.msra.mxu0 %v939
    %967 = vmatpush.msra.mxu0 %v938
    %968 = vmatpush.msra.mxu0 %v937
    %969 = vmatpush.msra.mxu0 %v936
    %970 = vmatpush.msra.mxu0 %v935
    %971 = vmatmul.f32.gmra.mxu0 %v903
    %v972 = vpop.f32.mrf.mxu0
    %v973 = vadd.f32 %v953, %v972
    %974 = vmatmul.f32.gmra.mxu0 %v904
    %v975 = vpop.f32.mrf.mxu0
    %v976 = vadd.f32 %v953, %v975
    %977 = vmatmul.f32.gmra.mxu0 %v905
    %v978 = vpop.f32.mrf.mxu0
    %v979 = vadd.f32 %v953, %v978
    %980 = vmatmul.f32.gmra.mxu0 %v906
    %v981 = vpop.f32.mrf.mxu0
    %v982 = vadd.f32 %v953, %v981
    %983 = vmatmul.f32.gmra.mxu0 %v907
    %v984 = vpop.f32.mrf.mxu0
    %v985 = vadd.f32 %v953, %v984
    %986 = vmatmul.f32.gmra.mxu0 %v908
    %v987 = vpop.f32.mrf.mxu0
    %v988 = vadd.f32 %v953, %v987
    %989 = vmatmul.f32.gmra.mxu0 %v909
    %v990 = vpop.f32.mrf.mxu0
    %v991 = vadd.f32 %v953, %v990
    %992 = vmatmul.f32.gmra.mxu0 %v910
    %v993 = vpop.f32.mrf.mxu0
    %v994 = vadd.f32 %v953, %v993
    %995 = vmatmul.f32.gmra.mxu0 %v911
    %v996 = vpop.f32.mrf.mxu0
    %v997 = vadd.f32 %v953, %v996
    %998 = vmatmul.f32.gmra.mxu0 %v912
    %v999 = vpop.f32.mrf.mxu0
    %v1000 = vadd.f32 %v953, %v999
    %1001 = vmatmul.f32.gmra.mxu0 %v913
    %v1002 = vpop.f32.mrf.mxu0
    %v1003 = vadd.f32 %v953, %v1002
    %1004 = vmatmul.f32.gmra.mxu0 %v914
    %v1005 = vpop.f32.mrf.mxu0
    %v1006 = vadd.f32 %v953, %v1005
    %1007 = vmatmul.f32.gmra.mxu0 %v915
    %v1008 = vpop.f32.mrf.mxu0
    %v1009 = vadd.f32 %v953, %v1008
    %1010 = vmatmul.f32.gmra.mxu0 %v916
    %v1011 = vpop.f32.mrf.mxu0
    %v1012 = vadd.f32 %v953, %v1011
    %1013 = vmatmul.f32.gmra.mxu0 %v917
    %v1014 = vpop.f32.mrf.mxu0
    %v1015 = vadd.f32 %v953, %v1014
    %1016 = vmatmul.f32.gmra.mxu0 %v918
    %v1017 = vpop.f32.mrf.mxu0
    %v1018 = vadd.f32 %v953, %v1017
    %1019 = vmatmul.f32.gmra.mxu0 %v919
    %v1020 = vpop.f32.mrf.mxu0
    %v1021 = vadd.f32 %v953, %v1020
    %1022 = vmatmul.f32.gmra.mxu0 %v920
    %v1023 = vpop.f32.mrf.mxu0
    %v1024 = vadd.f32 %v953, %v1023
    %1025 = vmatmul.f32.gmra.mxu0 %v921
    %v1026 = vpop.f32.mrf.mxu0
    %v1027 = vadd.f32 %v953, %v1026
    %1028 = vmatmul.f32.gmra.mxu0 %v922
    %v1029 = vpop.f32.mrf.mxu0
    %v1030 = vadd.f32 %v953, %v1029
    %1031 = vmatmul.f32.gmra.mxu0 %v923
    %v1032 = vpop.f32.mrf.mxu0
    %v1033 = vadd.f32 %v953, %v1032
    %1034 = vmatmul.f32.gmra.mxu0 %v924
    %v1035 = vpop.f32.mrf.mxu0
    %v1036 = vadd.f32 %v953, %v1035
    %1037 = vmatmul.f32.gmra.mxu0 %v925
    %v1038 = vpop.f32.mrf.mxu0
    %v1039 = vadd.f32 %v953, %v1038
    %1040 = vmatmul.f32.gmra.mxu0 %v926
    %v1041 = vpop.f32.mrf.mxu0
    %v1042 = vadd.f32 %v953, %v1041
    %1043 = vmatmul.f32.gmra.mxu0 %v927
    %v1044 = vpop.f32.mrf.mxu0
    %v1045 = vadd.f32 %v953, %v1044
    %1046 = vmatmul.f32.gmra.mxu0 %v928
    %v1047 = vpop.f32.mrf.mxu0
    %v1048 = vadd.f32 %v953, %v1047
    %1049 = vmatmul.f32.gmra.mxu0 %v929
    %v1050 = vpop.f32.mrf.mxu0
    %v1051 = vadd.f32 %v953, %v1050
    %1052 = vmatmul.f32.gmra.mxu0 %v930
    %v1053 = vpop.f32.mrf.mxu0
    %v1054 = vadd.f32 %v953, %v1053
    %1055 = vmatmul.f32.gmra.mxu0 %v931
    %v1056 = vpop.f32.mrf.mxu0
    %v1057 = vadd.f32 %v953, %v1056
    %1058 = vmatmul.f32.gmra.mxu0 %v932
    %v1059 = vpop.f32.mrf.mxu0
    %v1060 = vadd.f32 %v953, %v1059
    %1061 = vmatmul.f32.gmra.mxu0 %v933
    %v1062 = vpop.f32.mrf.mxu0
    %v1063 = vadd.f32 %v953, %v1062
    %1064 = vmatmul.f32.gmra.mxu0 %v934
    %v1065 = vpop.f32.mrf.mxu0
    %v1066 = vadd.f32 %v953, %v1065
    %1067 = vdwg.mxu0
    %v1068 = vsub.f32 0.0, %v973
    %v1069 = vsub.f32 0.0, %v976
    %v1070 = vsub.f32 0.0, %v979
    %v1071 = vsub.f32 0.0, %v982
    %v1072 = vsub.f32 0.0, %v985
    %v1073 = vsub.f32 0.0, %v988
    %v1074 = vsub.f32 0.0, %v991
    %v1075 = vsub.f32 0.0, %v994
    %v1076 = vsub.f32 0.0, %v997
    %v1077 = vsub.f32 0.0, %v1000
    %v1078 = vsub.f32 0.0, %v1003
    %v1079 = vsub.f32 0.0, %v1006
    %v1080 = vsub.f32 0.0, %v1009
    %v1081 = vsub.f32 0.0, %v1012
    %v1082 = vsub.f32 0.0, %v1015
    %v1083 = vsub.f32 0.0, %v1018
    %v1084 = vsub.f32 0.0, %v1021
    %v1085 = vsub.f32 0.0, %v1024
    %v1086 = vsub.f32 0.0, %v1027
    %v1087 = vsub.f32 0.0, %v1030
    %v1088 = vsub.f32 0.0, %v1033
    %v1089 = vsub.f32 0.0, %v1036
    %v1090 = vsub.f32 0.0, %v1039
    %v1091 = vsub.f32 0.0, %v1042
    %v1092 = vsub.f32 0.0, %v1045
    %v1093 = vsub.f32 0.0, %v1048
    %v1094 = vsub.f32 0.0, %v1051
    %v1095 = vsub.f32 0.0, %v1054
    %v1096 = vsub.f32 0.0, %v1057
    %v1097 = vsub.f32 0.0, %v1060
    %v1098 = vsub.f32 0.0, %v1063
    %v1099 = vsub.f32 0.0, %v1066
    %v1100 = vmul.f32 %v1068, 1.442695
    %v1101 = vpow.pop %v1100
    %v1102 = vmul.f32 %v1069, 1.442695
    %v1103 = vpow.pop %v1102
    %v1104 = vmul.f32 %v1070, 1.442695
    %v1105 = vpow.pop %v1104
    %v1106 = vmul.f32 %v1071, 1.442695
    %v1107 = vpow.pop %v1106
    %v1108 = vmul.f32 %v1072, 1.442695
    %v1109 = vpow.pop %v1108
    %v1110 = vmul.f32 %v1073, 1.442695
    %v1111 = vpow.pop %v1110
    %v1112 = vmul.f32 %v1074, 1.442695
    %v1113 = vpow.pop %v1112
    %v1114 = vmul.f32 %v1075, 1.442695
    %v1115 = vpow.pop %v1114
    %v1116 = vmul.f32 %v1076, 1.442695
    %v1117 = vpow.pop %v1116
    %v1118 = vmul.f32 %v1077, 1.442695
    %v1119 = vpow.pop %v1118
    %v1120 = vmul.f32 %v1078, 1.442695
    %v1121 = vpow.pop %v1120
    %v1122 = vmul.f32 %v1079, 1.442695
    %v1123 = vpow.pop %v1122
    %v1124 = vmul.f32 %v1080, 1.442695
    %v1125 = vpow.pop %v1124
    %v1126 = vmul.f32 %v1081, 1.442695
    %v1127 = vpow.pop %v1126
    %v1128 = vmul.f32 %v1082, 1.442695
    %v1129 = vpow.pop %v1128
    %v1130 = vmul.f32 %v1083, 1.442695
    %v1131 = vpow.pop %v1130
    %v1132 = vmul.f32 %v1084, 1.442695
    %v1133 = vpow.pop %v1132
    %v1134 = vmul.f32 %v1085, 1.442695
    %v1135 = vpow.pop %v1134
    %v1136 = vmul.f32 %v1086, 1.442695
    %v1137 = vpow.pop %v1136
    %v1138 = vmul.f32 %v1087, 1.442695
    %v1139 = vpow.pop %v1138
    %v1140 = vmul.f32 %v1088, 1.442695
    %v1141 = vpow.pop %v1140
    %v1142 = vmul.f32 %v1089, 1.442695
    %v1143 = vpow.pop %v1142
    %v1144 = vmul.f32 %v1090, 1.442695
    %v1145 = vpow.pop %v1144
    %v1146 = vmul.f32 %v1091, 1.442695
    %v1147 = vpow.pop %v1146
    %v1148 = vmul.f32 %v1092, 1.442695
    %v1149 = vpow.pop %v1148
    %v1150 = vmul.f32 %v1093, 1.442695
    %v1151 = vpow.pop %v1150
    %v1152 = vmul.f32 %v1094, 1.442695
    %v1153 = vpow.pop %v1152
    %v1154 = vmul.f32 %v1095, 1.442695
    %v1155 = vpow.pop %v1154
    %v1156 = vmul.f32 %v1096, 1.442695
    %v1157 = vpow.pop %v1156
    %v1158 = vmul.f32 %v1097, 1.442695
    %v1159 = vpow.pop %v1158
    %v1160 = vmul.f32 %v1098, 1.442695
    %v1161 = vpow.pop %v1160
    %v1162 = vmul.f32 %v1099, 1.442695
    %v1163 = vpow.pop %v1162
    %v1164 = vadd.f32 %v1101, 1.0
    %v1165 = vadd.f32 %v1103, 1.0
    %v1166 = vadd.f32 %v1105, 1.0
    %v1167 = vadd.f32 %v1107, 1.0
    %v1168 = vadd.f32 %v1109, 1.0
    %v1169 = vadd.f32 %v1111, 1.0
    %v1170 = vadd.f32 %v1113, 1.0
    %v1171 = vadd.f32 %v1115, 1.0
    %v1172 = vadd.f32 %v1117, 1.0
    %v1173 = vadd.f32 %v1119, 1.0
    %v1174 = vadd.f32 %v1121, 1.0
    %v1175 = vadd.f32 %v1123, 1.0
    %v1176 = vadd.f32 %v1125, 1.0
    %v1177 = vadd.f32 %v1127, 1.0
    %v1178 = vadd.f32 %v1129, 1.0
    %v1179 = vadd.f32 %v1131, 1.0
    %v1180 = vadd.f32 %v1133, 1.0
    %v1181 = vadd.f32 %v1135, 1.0
    %v1182 = vadd.f32 %v1137, 1.0
    %v1183 = vadd.f32 %v1139, 1.0
    %v1184 = vadd.f32 %v1141, 1.0
    %v1185 = vadd.f32 %v1143, 1.0
    %v1186 = vadd.f32 %v1145, 1.0
    %v1187 = vadd.f32 %v1147, 1.0
    %v1188 = vadd.f32 %v1149, 1.0
    %v1189 = vadd.f32 %v1151, 1.0
    %v1190 = vadd.f32 %v1153, 1.0
    %v1191 = vadd.f32 %v1155, 1.0
    %v1192 = vadd.f32 %v1157, 1.0
    %v1193 = vadd.f32 %v1159, 1.0
    %v1194 = vadd.f32 %v1161, 1.0
    %v1195 = vadd.f32 %v1163, 1.0
    %v1196 = vrcp.pop %v1164
    %v1197 = vmul.f32 %v1164, %v1196
    %v1198 = vsub.f32 1.0, %v1197
    %v1199 = vmul.f32 %v1196, %v1198
    %v1200 = vadd.f32 %v1196, %v1199
    %vm1201 = vweird.f32 %v1164
    %vm1202 = vweird.f32 %v1196
    %vm1203 = vmor %vm1201, %vm1202
    %v1204 = vsel %vm1203, %v1196, %v1200
    %v1205 = vand.u32 2147483647, %v1164
    %vm1206 = vcmp.eq.f32.partialorder %v1205, 8.507059e+37
    %v1207 = vand.u32 %v1164, 2147483648
    %v1208 = vor.u32 1.1754944e-38, %v1207
    %v1209 = vsel %vm1206, %v1208, %v1204
    %v1210 = vmul.f32 1.0, %v1209
    %v1211 = vrcp.pop %v1165
    %v1212 = vmul.f32 %v1165, %v1211
    %v1213 = vsub.f32 1.0, %v1212
    %v1214 = vmul.f32 %v1211, %v1213
    %v1215 = vadd.f32 %v1211, %v1214
    %vm1216 = vweird.f32 %v1165
    %vm1217 = vweird.f32 %v1211
    %vm1218 = vmor %vm1216, %vm1217
    %v1219 = vsel %vm1218, %v1211, %v1215
    %v1220 = vand.u32 2147483647, %v1165
    %vm1221 = vcmp.eq.f32.partialorder %v1220, 8.507059e+37
    %v1222 = vand.u32 %v1165, 2147483648
    %v1223 = vor.u32 1.1754944e-38, %v1222
    %v1224 = vsel %vm1221, %v1223, %v1219
    %v1225 = vmul.f32 1.0, %v1224
    %v1226 = vrcp.pop %v1166
    %v1227 = vmul.f32 %v1166, %v1226
    %v1228 = vsub.f32 1.0, %v1227
    %v1229 = vmul.f32 %v1226, %v1228
    %v1230 = vadd.f32 %v1226, %v1229
    %vm1231 = vweird.f32 %v1166
    %vm1232 = vweird.f32 %v1226
    %vm1233 = vmor %vm1231, %vm1232
    %v1234 = vsel %vm1233, %v1226, %v1230
    %v1235 = vand.u32 2147483647, %v1166
    %vm1236 = vcmp.eq.f32.partialorder %v1235, 8.507059e+37
    %v1237 = vand.u32 %v1166, 2147483648
    %v1238 = vor.u32 1.1754944e-38, %v1237
    %v1239 = vsel %vm1236, %v1238, %v1234
    %v1240 = vmul.f32 1.0, %v1239
    %v1241 = vrcp.pop %v1167
    %v1242 = vmul.f32 %v1167, %v1241
    %v1243 = vsub.f32 1.0, %v1242
    %v1244 = vmul.f32 %v1241, %v1243
    %v1245 = vadd.f32 %v1241, %v1244
    %vm1246 = vweird.f32 %v1167
    %vm1247 = vweird.f32 %v1241
    %vm1248 = vmor %vm1246, %vm1247
    %v1249 = vsel %vm1248, %v1241, %v1245
    %v1250 = vand.u32 2147483647, %v1167
    %vm1251 = vcmp.eq.f32.partialorder %v1250, 8.507059e+37
    %v1252 = vand.u32 %v1167, 2147483648
    %v1253 = vor.u32 1.1754944e-38, %v1252
    %v1254 = vsel %vm1251, %v1253, %v1249
    %v1255 = vmul.f32 1.0, %v1254
    %v1256 = vrcp.pop %v1168
    %v1257 = vmul.f32 %v1168, %v1256
    %v1258 = vsub.f32 1.0, %v1257
    %v1259 = vmul.f32 %v1256, %v1258
    %v1260 = vadd.f32 %v1256, %v1259
    %vm1261 = vweird.f32 %v1168
    %vm1262 = vweird.f32 %v1256
    %vm1263 = vmor %vm1261, %vm1262
    %v1264 = vsel %vm1263, %v1256, %v1260
    %v1265 = vand.u32 2147483647, %v1168
    %vm1266 = vcmp.eq.f32.partialorder %v1265, 8.507059e+37
    %v1267 = vand.u32 %v1168, 2147483648
    %v1268 = vor.u32 1.1754944e-38, %v1267
    %v1269 = vsel %vm1266, %v1268, %v1264
    %v1270 = vmul.f32 1.0, %v1269
    %v1271 = vrcp.pop %v1169
    %v1272 = vmul.f32 %v1169, %v1271
    %v1273 = vsub.f32 1.0, %v1272
    %v1274 = vmul.f32 %v1271, %v1273
    %v1275 = vadd.f32 %v1271, %v1274
    %vm1276 = vweird.f32 %v1169
    %vm1277 = vweird.f32 %v1271
    %vm1278 = vmor %vm1276, %vm1277
    %v1279 = vsel %vm1278, %v1271, %v1275
    %v1280 = vand.u32 2147483647, %v1169
    %vm1281 = vcmp.eq.f32.partialorder %v1280, 8.507059e+37
    %v1282 = vand.u32 %v1169, 2147483648
    %v1283 = vor.u32 1.1754944e-38, %v1282
    %v1284 = vsel %vm1281, %v1283, %v1279
    %v1285 = vmul.f32 1.0, %v1284
    %v1286 = vrcp.pop %v1170
    %v1287 = vmul.f32 %v1170, %v1286
    %v1288 = vsub.f32 1.0, %v1287
    %v1289 = vmul.f32 %v1286, %v1288
    %v1290 = vadd.f32 %v1286, %v1289
    %vm1291 = vweird.f32 %v1170
    %vm1292 = vweird.f32 %v1286
    %vm1293 = vmor %vm1291, %vm1292
    %v1294 = vsel %vm1293, %v1286, %v1290
    %v1295 = vand.u32 2147483647, %v1170
    %vm1296 = vcmp.eq.f32.partialorder %v1295, 8.507059e+37
    %v1297 = vand.u32 %v1170, 2147483648
    %v1298 = vor.u32 1.1754944e-38, %v1297
    %v1299 = vsel %vm1296, %v1298, %v1294
    %v1300 = vmul.f32 1.0, %v1299
    %v1301 = vrcp.pop %v1171
    %v1302 = vmul.f32 %v1171, %v1301
    %v1303 = vsub.f32 1.0, %v1302
    %v1304 = vmul.f32 %v1301, %v1303
    %v1305 = vadd.f32 %v1301, %v1304
    %vm1306 = vweird.f32 %v1171
    %vm1307 = vweird.f32 %v1301
    %vm1308 = vmor %vm1306, %vm1307
    %v1309 = vsel %vm1308, %v1301, %v1305
    %v1310 = vand.u32 2147483647, %v1171
    %vm1311 = vcmp.eq.f32.partialorder %v1310, 8.507059e+37
    %v1312 = vand.u32 %v1171, 2147483648
    %v1313 = vor.u32 1.1754944e-38, %v1312
    %v1314 = vsel %vm1311, %v1313, %v1309
    %v1315 = vmul.f32 1.0, %v1314
    %v1316 = vrcp.pop %v1172
    %v1317 = vmul.f32 %v1172, %v1316
    %v1318 = vsub.f32 1.0, %v1317
    %v1319 = vmul.f32 %v1316, %v1318
    %v1320 = vadd.f32 %v1316, %v1319
    %vm1321 = vweird.f32 %v1172
    %vm1322 = vweird.f32 %v1316
    %vm1323 = vmor %vm1321, %vm1322
    %v1324 = vsel %vm1323, %v1316, %v1320
    %v1325 = vand.u32 2147483647, %v1172
    %vm1326 = vcmp.eq.f32.partialorder %v1325, 8.507059e+37
    %v1327 = vand.u32 %v1172, 2147483648
    %v1328 = vor.u32 1.1754944e-38, %v1327
    %v1329 = vsel %vm1326, %v1328, %v1324
    %v1330 = vmul.f32 1.0, %v1329
    %v1331 = vrcp.pop %v1173
    %v1332 = vmul.f32 %v1173, %v1331
    %v1333 = vsub.f32 1.0, %v1332
    %v1334 = vmul.f32 %v1331, %v1333
    %v1335 = vadd.f32 %v1331, %v1334
    %vm1336 = vweird.f32 %v1173
    %vm1337 = vweird.f32 %v1331
    %vm1338 = vmor %vm1336, %vm1337
    %v1339 = vsel %vm1338, %v1331, %v1335
    %v1340 = vand.u32 2147483647, %v1173
    %vm1341 = vcmp.eq.f32.partialorder %v1340, 8.507059e+37
    %v1342 = vand.u32 %v1173, 2147483648
    %v1343 = vor.u32 1.1754944e-38, %v1342
    %v1344 = vsel %vm1341, %v1343, %v1339
    %v1345 = vmul.f32 1.0, %v1344
    %v1346 = vrcp.pop %v1174
    %v1347 = vmul.f32 %v1174, %v1346
    %v1348 = vsub.f32 1.0, %v1347
    %v1349 = vmul.f32 %v1346, %v1348
    %v1350 = vadd.f32 %v1346, %v1349
    %vm1351 = vweird.f32 %v1174
    %vm1352 = vweird.f32 %v1346
    %vm1353 = vmor %vm1351, %vm1352
    %v1354 = vsel %vm1353, %v1346, %v1350
    %v1355 = vand.u32 2147483647, %v1174
    %vm1356 = vcmp.eq.f32.partialorder %v1355, 8.507059e+37
    %v1357 = vand.u32 %v1174, 2147483648
    %v1358 = vor.u32 1.1754944e-38, %v1357
    %v1359 = vsel %vm1356, %v1358, %v1354
    %v1360 = vmul.f32 1.0, %v1359
    %v1361 = vrcp.pop %v1175
    %v1362 = vmul.f32 %v1175, %v1361
    %v1363 = vsub.f32 1.0, %v1362
    %v1364 = vmul.f32 %v1361, %v1363
    %v1365 = vadd.f32 %v1361, %v1364
    %vm1366 = vweird.f32 %v1175
    %vm1367 = vweird.f32 %v1361
    %vm1368 = vmor %vm1366, %vm1367
    %v1369 = vsel %vm1368, %v1361, %v1365
    %v1370 = vand.u32 2147483647, %v1175
    %vm1371 = vcmp.eq.f32.partialorder %v1370, 8.507059e+37
    %v1372 = vand.u32 %v1175, 2147483648
    %v1373 = vor.u32 1.1754944e-38, %v1372
    %v1374 = vsel %vm1371, %v1373, %v1369
    %v1375 = vmul.f32 1.0, %v1374
    %v1376 = vrcp.pop %v1176
    %v1377 = vmul.f32 %v1176, %v1376
    %v1378 = vsub.f32 1.0, %v1377
    %v1379 = vmul.f32 %v1376, %v1378
    %v1380 = vadd.f32 %v1376, %v1379
    %vm1381 = vweird.f32 %v1176
    %vm1382 = vweird.f32 %v1376
    %vm1383 = vmor %vm1381, %vm1382
    %v1384 = vsel %vm1383, %v1376, %v1380
    %v1385 = vand.u32 2147483647, %v1176
    %vm1386 = vcmp.eq.f32.partialorder %v1385, 8.507059e+37
    %v1387 = vand.u32 %v1176, 2147483648
    %v1388 = vor.u32 1.1754944e-38, %v1387
    %v1389 = vsel %vm1386, %v1388, %v1384
    %v1390 = vmul.f32 1.0, %v1389
    %v1391 = vrcp.pop %v1177
    %v1392 = vmul.f32 %v1177, %v1391
    %v1393 = vsub.f32 1.0, %v1392
    %v1394 = vmul.f32 %v1391, %v1393
    %v1395 = vadd.f32 %v1391, %v1394
    %vm1396 = vweird.f32 %v1177
    %vm1397 = vweird.f32 %v1391
    %vm1398 = vmor %vm1396, %vm1397
    %v1399 = vsel %vm1398, %v1391, %v1395
    %v1400 = vand.u32 2147483647, %v1177
    %vm1401 = vcmp.eq.f32.partialorder %v1400, 8.507059e+37
    %v1402 = vand.u32 %v1177, 2147483648
    %v1403 = vor.u32 1.1754944e-38, %v1402
    %v1404 = vsel %vm1401, %v1403, %v1399
    %v1405 = vmul.f32 1.0, %v1404
    %v1406 = vrcp.pop %v1178
    %v1407 = vmul.f32 %v1178, %v1406
    %v1408 = vsub.f32 1.0, %v1407
    %v1409 = vmul.f32 %v1406, %v1408
    %v1410 = vadd.f32 %v1406, %v1409
    %vm1411 = vweird.f32 %v1178
    %vm1412 = vweird.f32 %v1406
    %vm1413 = vmor %vm1411, %vm1412
    %v1414 = vsel %vm1413, %v1406, %v1410
    %v1415 = vand.u32 2147483647, %v1178
    %vm1416 = vcmp.eq.f32.partialorder %v1415, 8.507059e+37
    %v1417 = vand.u32 %v1178, 2147483648
    %v1418 = vor.u32 1.1754944e-38, %v1417
    %v1419 = vsel %vm1416, %v1418, %v1414
    %v1420 = vmul.f32 1.0, %v1419
    %v1421 = vrcp.pop %v1179
    %v1422 = vmul.f32 %v1179, %v1421
    %v1423 = vsub.f32 1.0, %v1422
    %v1424 = vmul.f32 %v1421, %v1423
    %v1425 = vadd.f32 %v1421, %v1424
    %vm1426 = vweird.f32 %v1179
    %vm1427 = vweird.f32 %v1421
    %vm1428 = vmor %vm1426, %vm1427
    %v1429 = vsel %vm1428, %v1421, %v1425
    %v1430 = vand.u32 2147483647, %v1179
    %vm1431 = vcmp.eq.f32.partialorder %v1430, 8.507059e+37
    %v1432 = vand.u32 %v1179, 2147483648
    %v1433 = vor.u32 1.1754944e-38, %v1432
    %v1434 = vsel %vm1431, %v1433, %v1429
    %v1435 = vmul.f32 1.0, %v1434
    %v1436 = vrcp.pop %v1180
    %v1437 = vmul.f32 %v1180, %v1436
    %v1438 = vsub.f32 1.0, %v1437
    %v1439 = vmul.f32 %v1436, %v1438
    %v1440 = vadd.f32 %v1436, %v1439
    %vm1441 = vweird.f32 %v1180
    %vm1442 = vweird.f32 %v1436
    %vm1443 = vmor %vm1441, %vm1442
    %v1444 = vsel %vm1443, %v1436, %v1440
    %v1445 = vand.u32 2147483647, %v1180
    %vm1446 = vcmp.eq.f32.partialorder %v1445, 8.507059e+37
    %v1447 = vand.u32 %v1180, 2147483648
    %v1448 = vor.u32 1.1754944e-38, %v1447
    %v1449 = vsel %vm1446, %v1448, %v1444
    %v1450 = vmul.f32 1.0, %v1449
    %v1451 = vrcp.pop %v1181
    %v1452 = vmul.f32 %v1181, %v1451
    %v1453 = vsub.f32 1.0, %v1452
    %v1454 = vmul.f32 %v1451, %v1453
    %v1455 = vadd.f32 %v1451, %v1454
    %vm1456 = vweird.f32 %v1181
    %vm1457 = vweird.f32 %v1451
    %vm1458 = vmor %vm1456, %vm1457
    %v1459 = vsel %vm1458, %v1451, %v1455
    %v1460 = vand.u32 2147483647, %v1181
    %vm1461 = vcmp.eq.f32.partialorder %v1460, 8.507059e+37
    %v1462 = vand.u32 %v1181, 2147483648
    %v1463 = vor.u32 1.1754944e-38, %v1462
    %v1464 = vsel %vm1461, %v1463, %v1459
    %v1465 = vmul.f32 1.0, %v1464
    %v1466 = vrcp.pop %v1182
    %v1467 = vmul.f32 %v1182, %v1466
    %v1468 = vsub.f32 1.0, %v1467
    %v1469 = vmul.f32 %v1466, %v1468
    %v1470 = vadd.f32 %v1466, %v1469
    %vm1471 = vweird.f32 %v1182
    %vm1472 = vweird.f32 %v1466
    %vm1473 = vmor %vm1471, %vm1472
    %v1474 = vsel %vm1473, %v1466, %v1470
    %v1475 = vand.u32 2147483647, %v1182
    %vm1476 = vcmp.eq.f32.partialorder %v1475, 8.507059e+37
    %v1477 = vand.u32 %v1182, 2147483648
    %v1478 = vor.u32 1.1754944e-38, %v1477
    %v1479 = vsel %vm1476, %v1478, %v1474
    %v1480 = vmul.f32 1.0, %v1479
    %v1481 = vrcp.pop %v1183
    %v1482 = vmul.f32 %v1183, %v1481
    %v1483 = vsub.f32 1.0, %v1482
    %v1484 = vmul.f32 %v1481, %v1483
    %v1485 = vadd.f32 %v1481, %v1484
    %vm1486 = vweird.f32 %v1183
    %vm1487 = vweird.f32 %v1481
    %vm1488 = vmor %vm1486, %vm1487
    %v1489 = vsel %vm1488, %v1481, %v1485
    %v1490 = vand.u32 2147483647, %v1183
    %vm1491 = vcmp.eq.f32.partialorder %v1490, 8.507059e+37
    %v1492 = vand.u32 %v1183, 2147483648
    %v1493 = vor.u32 1.1754944e-38, %v1492
    %v1494 = vsel %vm1491, %v1493, %v1489
    %v1495 = vmul.f32 1.0, %v1494
    %v1496 = vrcp.pop %v1184
    %v1497 = vmul.f32 %v1184, %v1496
    %v1498 = vsub.f32 1.0, %v1497
    %v1499 = vmul.f32 %v1496, %v1498
    %v1500 = vadd.f32 %v1496, %v1499
    %vm1501 = vweird.f32 %v1184
    %vm1502 = vweird.f32 %v1496
    %vm1503 = vmor %vm1501, %vm1502
    %v1504 = vsel %vm1503, %v1496, %v1500
    %v1505 = vand.u32 2147483647, %v1184
    %vm1506 = vcmp.eq.f32.partialorder %v1505, 8.507059e+37
    %v1507 = vand.u32 %v1184, 2147483648
    %v1508 = vor.u32 1.1754944e-38, %v1507
    %v1509 = vsel %vm1506, %v1508, %v1504
    %v1510 = vmul.f32 1.0, %v1509
    %v1511 = vrcp.pop %v1185
    %v1512 = vmul.f32 %v1185, %v1511
    %v1513 = vsub.f32 1.0, %v1512
    %v1514 = vmul.f32 %v1511, %v1513
    %v1515 = vadd.f32 %v1511, %v1514
    %vm1516 = vweird.f32 %v1185
    %vm1517 = vweird.f32 %v1511
    %vm1518 = vmor %vm1516, %vm1517
    %v1519 = vsel %vm1518, %v1511, %v1515
    %v1520 = vand.u32 2147483647, %v1185
    %vm1521 = vcmp.eq.f32.partialorder %v1520, 8.507059e+37
    %v1522 = vand.u32 %v1185, 2147483648
    %v1523 = vor.u32 1.1754944e-38, %v1522
    %v1524 = vsel %vm1521, %v1523, %v1519
    %v1525 = vmul.f32 1.0, %v1524
    %v1526 = vrcp.pop %v1186
    %v1527 = vmul.f32 %v1186, %v1526
    %v1528 = vsub.f32 1.0, %v1527
    %v1529 = vmul.f32 %v1526, %v1528
    %v1530 = vadd.f32 %v1526, %v1529
    %vm1531 = vweird.f32 %v1186
    %vm1532 = vweird.f32 %v1526
    %vm1533 = vmor %vm1531, %vm1532
    %v1534 = vsel %vm1533, %v1526, %v1530
    %v1535 = vand.u32 2147483647, %v1186
    %vm1536 = vcmp.eq.f32.partialorder %v1535, 8.507059e+37
    %v1537 = vand.u32 %v1186, 2147483648
    %v1538 = vor.u32 1.1754944e-38, %v1537
    %v1539 = vsel %vm1536, %v1538, %v1534
    %v1540 = vmul.f32 1.0, %v1539
    %v1541 = vrcp.pop %v1187
    %v1542 = vmul.f32 %v1187, %v1541
    %v1543 = vsub.f32 1.0, %v1542
    %v1544 = vmul.f32 %v1541, %v1543
    %v1545 = vadd.f32 %v1541, %v1544
    %vm1546 = vweird.f32 %v1187
    %vm1547 = vweird.f32 %v1541
    %vm1548 = vmor %vm1546, %vm1547
    %v1549 = vsel %vm1548, %v1541, %v1545
    %v1550 = vand.u32 2147483647, %v1187
    %vm1551 = vcmp.eq.f32.partialorder %v1550, 8.507059e+37
    %v1552 = vand.u32 %v1187, 2147483648
    %v1553 = vor.u32 1.1754944e-38, %v1552
    %v1554 = vsel %vm1551, %v1553, %v1549
    %v1555 = vmul.f32 1.0, %v1554
    %v1556 = vrcp.pop %v1188
    %v1557 = vmul.f32 %v1188, %v1556
    %v1558 = vsub.f32 1.0, %v1557
    %v1559 = vmul.f32 %v1556, %v1558
    %v1560 = vadd.f32 %v1556, %v1559
    %vm1561 = vweird.f32 %v1188
    %vm1562 = vweird.f32 %v1556
    %vm1563 = vmor %vm1561, %vm1562
    %v1564 = vsel %vm1563, %v1556, %v1560
    %v1565 = vand.u32 2147483647, %v1188
    %vm1566 = vcmp.eq.f32.partialorder %v1565, 8.507059e+37
    %v1567 = vand.u32 %v1188, 2147483648
    %v1568 = vor.u32 1.1754944e-38, %v1567
    %v1569 = vsel %vm1566, %v1568, %v1564
    %v1570 = vmul.f32 1.0, %v1569
    %v1571 = vrcp.pop %v1189
    %v1572 = vmul.f32 %v1189, %v1571
    %v1573 = vsub.f32 1.0, %v1572
    %v1574 = vmul.f32 %v1571, %v1573
    %v1575 = vadd.f32 %v1571, %v1574
    %vm1576 = vweird.f32 %v1189
    %vm1577 = vweird.f32 %v1571
    %vm1578 = vmor %vm1576, %vm1577
    %v1579 = vsel %vm1578, %v1571, %v1575
    %v1580 = vand.u32 2147483647, %v1189
    %vm1581 = vcmp.eq.f32.partialorder %v1580, 8.507059e+37
    %v1582 = vand.u32 %v1189, 2147483648
    %v1583 = vor.u32 1.1754944e-38, %v1582
    %v1584 = vsel %vm1581, %v1583, %v1579
    %v1585 = vmul.f32 1.0, %v1584
    %v1586 = vrcp.pop %v1190
    %v1587 = vmul.f32 %v1190, %v1586
    %v1588 = vsub.f32 1.0, %v1587
    %v1589 = vmul.f32 %v1586, %v1588
    %v1590 = vadd.f32 %v1586, %v1589
    %vm1591 = vweird.f32 %v1190
    %vm1592 = vweird.f32 %v1586
    %vm1593 = vmor %vm1591, %vm1592
    %v1594 = vsel %vm1593, %v1586, %v1590
    %v1595 = vand.u32 2147483647, %v1190
    %vm1596 = vcmp.eq.f32.partialorder %v1595, 8.507059e+37
    %v1597 = vand.u32 %v1190, 2147483648
    %v1598 = vor.u32 1.1754944e-38, %v1597
    %v1599 = vsel %vm1596, %v1598, %v1594
    %v1600 = vmul.f32 1.0, %v1599
    %v1601 = vrcp.pop %v1191
    %v1602 = vmul.f32 %v1191, %v1601
    %v1603 = vsub.f32 1.0, %v1602
    %v1604 = vmul.f32 %v1601, %v1603
    %v1605 = vadd.f32 %v1601, %v1604
    %vm1606 = vweird.f32 %v1191
    %vm1607 = vweird.f32 %v1601
    %vm1608 = vmor %vm1606, %vm1607
    %v1609 = vsel %vm1608, %v1601, %v1605
    %v1610 = vand.u32 2147483647, %v1191
    %vm1611 = vcmp.eq.f32.partialorder %v1610, 8.507059e+37
    %v1612 = vand.u32 %v1191, 2147483648
    %v1613 = vor.u32 1.1754944e-38, %v1612
    %v1614 = vsel %vm1611, %v1613, %v1609
    %v1615 = vmul.f32 1.0, %v1614
    %v1616 = vrcp.pop %v1192
    %v1617 = vmul.f32 %v1192, %v1616
    %v1618 = vsub.f32 1.0, %v1617
    %v1619 = vmul.f32 %v1616, %v1618
    %v1620 = vadd.f32 %v1616, %v1619
    %vm1621 = vweird.f32 %v1192
    %vm1622 = vweird.f32 %v1616
    %vm1623 = vmor %vm1621, %vm1622
    %v1624 = vsel %vm1623, %v1616, %v1620
    %v1625 = vand.u32 2147483647, %v1192
    %vm1626 = vcmp.eq.f32.partialorder %v1625, 8.507059e+37
    %v1627 = vand.u32 %v1192, 2147483648
    %v1628 = vor.u32 1.1754944e-38, %v1627
    %v1629 = vsel %vm1626, %v1628, %v1624
    %v1630 = vmul.f32 1.0, %v1629
    %v1631 = vrcp.pop %v1193
    %v1632 = vmul.f32 %v1193, %v1631
    %v1633 = vsub.f32 1.0, %v1632
    %v1634 = vmul.f32 %v1631, %v1633
    %v1635 = vadd.f32 %v1631, %v1634
    %vm1636 = vweird.f32 %v1193
    %vm1637 = vweird.f32 %v1631
    %vm1638 = vmor %vm1636, %vm1637
    %v1639 = vsel %vm1638, %v1631, %v1635
    %v1640 = vand.u32 2147483647, %v1193
    %vm1641 = vcmp.eq.f32.partialorder %v1640, 8.507059e+37
    %v1642 = vand.u32 %v1193, 2147483648
    %v1643 = vor.u32 1.1754944e-38, %v1642
    %v1644 = vsel %vm1641, %v1643, %v1639
    %v1645 = vmul.f32 1.0, %v1644
    %v1646 = vrcp.pop %v1194
    %v1647 = vmul.f32 %v1194, %v1646
    %v1648 = vsub.f32 1.0, %v1647
    %v1649 = vmul.f32 %v1646, %v1648
    %v1650 = vadd.f32 %v1646, %v1649
    %vm1651 = vweird.f32 %v1194
    %vm1652 = vweird.f32 %v1646
    %vm1653 = vmor %vm1651, %vm1652
    %v1654 = vsel %vm1653, %v1646, %v1650
    %v1655 = vand.u32 2147483647, %v1194
    %vm1656 = vcmp.eq.f32.partialorder %v1655, 8.507059e+37
    %v1657 = vand.u32 %v1194, 2147483648
    %v1658 = vor.u32 1.1754944e-38, %v1657
    %v1659 = vsel %vm1656, %v1658, %v1654
    %v1660 = vmul.f32 1.0, %v1659
    %v1661 = vrcp.pop %v1195
    %v1662 = vmul.f32 %v1195, %v1661
    %v1663 = vsub.f32 1.0, %v1662
    %v1664 = vmul.f32 %v1661, %v1663
    %v1665 = vadd.f32 %v1661, %v1664
    %vm1666 = vweird.f32 %v1195
    %vm1667 = vweird.f32 %v1661
    %vm1668 = vmor %vm1666, %vm1667
    %v1669 = vsel %vm1668, %v1661, %v1665
    %v1670 = vand.u32 2147483647, %v1195
    %vm1671 = vcmp.eq.f32.partialorder %v1670, 8.507059e+37
    %v1672 = vand.u32 %v1195, 2147483648
    %v1673 = vor.u32 1.1754944e-38, %v1672
    %v1674 = vsel %vm1671, %v1673, %v1669
    %v1675 = vmul.f32 1.0, %v1674
    %v1676 = vld [vmem:[%s9] sm:$0xff]
    %v1677 = vld [vmem:[%s9 + $0x8] sm:$0xff]
    %v1678 = vld [vmem:[%s10] sm:$0x1]
    %v1680 = vperm.slane %v1678, 0
    %1682 = vmatpush.msra.mxu0 0.0
    %1683 = vmatpush.msra.mxu0 0.0
    %1684 = vmatpush.msra.mxu0 0.0
    %1685 = vmatpush.msra.mxu0 0.0
    %1686 = vmatpush.msra.mxu0 0.0
    %1687 = vmatpush.msra.mxu0 0.0
    %1688 = vmatpush.msra.mxu0 0.0
    %1689 = vmatpush.msra.mxu0 0.0
    %1690 = vmatpush.msra.mxu0 0.0
    %1691 = vmatpush.msra.mxu0 0.0
    %1692 = vmatpush.msra.mxu0 0.0
    %1693 = vmatpush.msra.mxu0 0.0
    %1694 = vmatpush.msra.mxu0 0.0
    %1695 = vmatpush.msra.mxu0 0.0
    %1696 = vmatpush.msra.mxu0 %v1677
    %1697 = vmatpush.msra.mxu0 %v1676
    %1698 = vmatmul.f32.gmra.mxu0 %v631
    %v1699 = vpop.f32.mrf.mxu0
    %v1700 = vadd.f32 %v1680, %v1699
    %1701 = vmatmul.f32.gmra.mxu0 %v634
    %v1702 = vpop.f32.mrf.mxu0
    %v1703 = vadd.f32 %v1680, %v1702
    %1704 = vmatmul.f32.gmra.mxu0 %v637
    %v1705 = vpop.f32.mrf.mxu0
    %v1706 = vadd.f32 %v1680, %v1705
    %1707 = vmatmul.f32.gmra.mxu0 %v640
    %v1708 = vpop.f32.mrf.mxu0
    %v1709 = vadd.f32 %v1680, %v1708
    %1710 = vmatmul.f32.gmra.mxu0 %v643
    %v1711 = vpop.f32.mrf.mxu0
    %v1712 = vadd.f32 %v1680, %v1711
    %1713 = vmatmul.f32.gmra.mxu0 %v646
    %v1714 = vpop.f32.mrf.mxu0
    %v1715 = vadd.f32 %v1680, %v1714
    %1716 = vmatmul.f32.gmra.mxu0 %v649
    %v1717 = vpop.f32.mrf.mxu0
    %v1718 = vadd.f32 %v1680, %v1717
    %1719 = vmatmul.f32.gmra.mxu0 %v652
    %v1720 = vpop.f32.mrf.mxu0
    %v1721 = vadd.f32 %v1680, %v1720
    %1722 = vmatmul.f32.gmra.mxu0 %v655
    %v1723 = vpop.f32.mrf.mxu0
    %v1724 = vadd.f32 %v1680, %v1723
    %1725 = vmatmul.f32.gmra.mxu0 %v658
    %v1726 = vpop.f32.mrf.mxu0
    %v1727 = vadd.f32 %v1680, %v1726
    %1728 = vmatmul.f32.gmra.mxu0 %v661
    %v1729 = vpop.f32.mrf.mxu0
    %v1730 = vadd.f32 %v1680, %v1729
    %1731 = vmatmul.f32.gmra.mxu0 %v664
    %v1732 = vpop.f32.mrf.mxu0
    %v1733 = vadd.f32 %v1680, %v1732
    %1734 = vmatmul.f32.gmra.mxu0 %v667
    %v1735 = vpop.f32.mrf.mxu0
    %v1736 = vadd.f32 %v1680, %v1735
    %1737 = vmatmul.f32.gmra.mxu0 %v670
    %v1738 = vpop.f32.mrf.mxu0
    %v1739 = vadd.f32 %v1680, %v1738
    %1740 = vmatmul.f32.gmra.mxu0 %v673
    %v1741 = vpop.f32.mrf.mxu0
    %v1742 = vadd.f32 %v1680, %v1741
    %1743 = vmatmul.f32.gmra.mxu0 %v676
    %v1744 = vpop.f32.mrf.mxu0
    %v1745 = vadd.f32 %v1680, %v1744
    %1746 = vmatmul.f32.gmra.mxu0 %v679
    %v1747 = vpop.f32.mrf.mxu0
    %v1748 = vadd.f32 %v1680, %v1747
    %1749 = vmatmul.f32.gmra.mxu0 %v682
    %v1750 = vpop.f32.mrf.mxu0
    %v1751 = vadd.f32 %v1680, %v1750
    %1752 = vmatmul.f32.gmra.mxu0 %v685
    %v1753 = vpop.f32.mrf.mxu0
    %v1754 = vadd.f32 %v1680, %v1753
    %1755 = vmatmul.f32.gmra.mxu0 %v688
    %v1756 = vpop.f32.mrf.mxu0
    %v1757 = vadd.f32 %v1680, %v1756
    %1758 = vmatmul.f32.gmra.mxu0 %v691
    %v1759 = vpop.f32.mrf.mxu0
    %v1760 = vadd.f32 %v1680, %v1759
    %1761 = vmatmul.f32.gmra.mxu0 %v694
    %v1762 = vpop.f32.mrf.mxu0
    %v1763 = vadd.f32 %v1680, %v1762
    %1764 = vmatmul.f32.gmra.mxu0 %v697
    %v1765 = vpop.f32.mrf.mxu0
    %v1766 = vadd.f32 %v1680, %v1765
    %1767 = vmatmul.f32.gmra.mxu0 %v700
    %v1768 = vpop.f32.mrf.mxu0
    %v1769 = vadd.f32 %v1680, %v1768
    %1770 = vmatmul.f32.gmra.mxu0 %v703
    %v1771 = vpop.f32.mrf.mxu0
    %v1772 = vadd.f32 %v1680, %v1771
    %1773 = vmatmul.f32.gmra.mxu0 %v706
    %v1774 = vpop.f32.mrf.mxu0
    %v1775 = vadd.f32 %v1680, %v1774
    %1776 = vmatmul.f32.gmra.mxu0 %v709
    %v1777 = vpop.f32.mrf.mxu0
    %v1778 = vadd.f32 %v1680, %v1777
    %1779 = vmatmul.f32.gmra.mxu0 %v712
    %v1780 = vpop.f32.mrf.mxu0
    %v1781 = vadd.f32 %v1680, %v1780
    %1782 = vmatmul.f32.gmra.mxu0 %v715
    %v1783 = vpop.f32.mrf.mxu0
    %v1784 = vadd.f32 %v1680, %v1783
    %1785 = vmatmul.f32.gmra.mxu0 %v718
    %v1786 = vpop.f32.mrf.mxu0
    %v1787 = vadd.f32 %v1680, %v1786
    %1788 = vmatmul.f32.gmra.mxu0 %v721
    %v1789 = vpop.f32.mrf.mxu0
    %v1790 = vadd.f32 %v1680, %v1789
    %1791 = vmatmul.f32.gmra.mxu0 %v724
    %v1792 = vpop.f32.mrf.mxu0
    %v1793 = vadd.f32 %v1680, %v1792
    %1794 = vdwg.mxu0
    %vm1795 = vcmp.ge.f32.partialorder %v1700, 0.0
    %vm1796 = vcmp.ge.f32.partialorder %v1703, 0.0
    %vm1797 = vcmp.ge.f32.partialorder %v1706, 0.0
    %vm1798 = vcmp.ge.f32.partialorder %v1709, 0.0
    %vm1799 = vcmp.ge.f32.partialorder %v1712, 0.0
    %vm1800 = vcmp.ge.f32.partialorder %v1715, 0.0
    %vm1801 = vcmp.ge.f32.partialorder %v1718, 0.0
    %vm1802 = vcmp.ge.f32.partialorder %v1721, 0.0
    %vm1803 = vcmp.ge.f32.partialorder %v1724, 0.0
    %vm1804 = vcmp.ge.f32.partialorder %v1727, 0.0
    %vm1805 = vcmp.ge.f32.partialorder %v1730, 0.0
    %vm1806 = vcmp.ge.f32.partialorder %v1733, 0.0
    %vm1807 = vcmp.ge.f32.partialorder %v1736, 0.0
    %vm1808 = vcmp.ge.f32.partialorder %v1739, 0.0
    %vm1809 = vcmp.ge.f32.partialorder %v1742, 0.0
    %vm1810 = vcmp.ge.f32.partialorder %v1745, 0.0
    %vm1811 = vcmp.ge.f32.partialorder %v1748, 0.0
    %vm1812 = vcmp.ge.f32.partialorder %v1751, 0.0
    %vm1813 = vcmp.ge.f32.partialorder %v1754, 0.0
    %vm1814 = vcmp.ge.f32.partialorder %v1757, 0.0
    %vm1815 = vcmp.ge.f32.partialorder %v1760, 0.0
    %vm1816 = vcmp.ge.f32.partialorder %v1763, 0.0
    %vm1817 = vcmp.ge.f32.partialorder %v1766, 0.0
    %vm1818 = vcmp.ge.f32.partialorder %v1769, 0.0
    %vm1819 = vcmp.ge.f32.partialorder %v1772, 0.0
    %vm1820 = vcmp.ge.f32.partialorder %v1775, 0.0
    %vm1821 = vcmp.ge.f32.partialorder %v1778, 0.0
    %vm1822 = vcmp.ge.f32.partialorder %v1781, 0.0
    %vm1823 = vcmp.ge.f32.partialorder %v1784, 0.0
    %vm1824 = vcmp.ge.f32.partialorder %v1787, 0.0
    %vm1825 = vcmp.ge.f32.partialorder %v1790, 0.0
    %vm1826 = vcmp.ge.f32.partialorder %v1793, 0.0
    %v1827 = vmul.f32 %v1700, 0.01
    %v1828 = vmul.f32 %v1703, 0.01
    %v1829 = vmul.f32 %v1706, 0.01
    %v1830 = vmul.f32 %v1709, 0.01
    %v1831 = vmul.f32 %v1712, 0.01
    %v1832 = vmul.f32 %v1715, 0.01
    %v1833 = vmul.f32 %v1718, 0.01
    %v1834 = vmul.f32 %v1721, 0.01
    %v1835 = vmul.f32 %v1724, 0.01
    %v1836 = vmul.f32 %v1727, 0.01
    %v1837 = vmul.f32 %v1730, 0.01
    %v1838 = vmul.f32 %v1733, 0.01
    %v1839 = vmul.f32 %v1736, 0.01
    %v1840 = vmul.f32 %v1739, 0.01
    %v1841 = vmul.f32 %v1742, 0.01
    %v1842 = vmul.f32 %v1745, 0.01
    %v1843 = vmul.f32 %v1748, 0.01
    %v1844 = vmul.f32 %v1751, 0.01
    %v1845 = vmul.f32 %v1754, 0.01
    %v1846 = vmul.f32 %v1757, 0.01
    %v1847 = vmul.f32 %v1760, 0.01
    %v1848 = vmul.f32 %v1763, 0.01
    %v1849 = vmul.f32 %v1766, 0.01
    %v1850 = vmul.f32 %v1769, 0.01
    %v1851 = vmul.f32 %v1772, 0.01
    %v1852 = vmul.f32 %v1775, 0.01
    %v1853 = vmul.f32 %v1778, 0.01
    %v1854 = vmul.f32 %v1781, 0.01
    %v1855 = vmul.f32 %v1784, 0.01
    %v1856 = vmul.f32 %v1787, 0.01
    %v1857 = vmul.f32 %v1790, 0.01
    %v1858 = vmul.f32 %v1793, 0.01
    %v1859 = vsel %vm1795, %v1700, %v1827
    %v1860 = vsel %vm1796, %v1703, %v1828
    %v1861 = vsel %vm1797, %v1706, %v1829
    %v1862 = vsel %vm1798, %v1709, %v1830
    %v1863 = vsel %vm1799, %v1712, %v1831
    %v1864 = vsel %vm1800, %v1715, %v1832
    %v1865 = vsel %vm1801, %v1718, %v1833
    %v1866 = vsel %vm1802, %v1721, %v1834
    %v1867 = vsel %vm1803, %v1724, %v1835
    %v1868 = vsel %vm1804, %v1727, %v1836
    %v1869 = vsel %vm1805, %v1730, %v1837
    %v1870 = vsel %vm1806, %v1733, %v1838
    %v1871 = vsel %vm1807, %v1736, %v1839
    %v1872 = vsel %vm1808, %v1739, %v1840
    %v1873 = vsel %vm1809, %v1742, %v1841
    %v1874 = vsel %vm1810, %v1745, %v1842
    %v1875 = vsel %vm1811, %v1748, %v1843
    %v1876 = vsel %vm1812, %v1751, %v1844
    %v1877 = vsel %vm1813, %v1754, %v1845
    %v1878 = vsel %vm1814, %v1757, %v1846
    %v1879 = vsel %vm1815, %v1760, %v1847
    %v1880 = vsel %vm1816, %v1763, %v1848
    %v1881 = vsel %vm1817, %v1766, %v1849
    %v1882 = vsel %vm1818, %v1769, %v1850
    %v1883 = vsel %vm1819, %v1772, %v1851
    %v1884 = vsel %vm1820, %v1775, %v1852
    %v1885 = vsel %vm1821, %v1778, %v1853
    %v1886 = vsel %vm1822, %v1781, %v1854
    %v1887 = vsel %vm1823, %v1784, %v1855
    %v1888 = vsel %vm1824, %v1787, %v1856
    %v1889 = vsel %vm1825, %v1790, %v1857
    %v1890 = vsel %vm1826, %v1793, %v1858
    %v1891 = vld [vmem:[%s11] sm:$0xff]
    %v1892 = vld [vmem:[%s11 + $0x8] sm:$0xff]
    %v1893 = vld [vmem:[%s11 + $0x10] sm:$0xff]
    %v1894 = vld [vmem:[%s11 + $0x18] sm:$0xff]
    %v1895 = vld [vmem:[%s12] sm:$0x1]
    %v1897 = vperm.slane %v1895, 0
    %vm1899 = vcmask 261120
    %v1901 = vsel %vm1899, %v1859, 0
    %v1904 = vsel %vm1899, %v1860, 0
    %v1907 = vsel %vm1899, %v1861, 0
    %v1910 = vsel %vm1899, %v1862, 0
    %v1913 = vsel %vm1899, %v1863, 0
    %v1916 = vsel %vm1899, %v1864, 0
    %v1919 = vsel %vm1899, %v1865, 0
    %v1922 = vsel %vm1899, %v1866, 0
    %v1925 = vsel %vm1899, %v1867, 0
    %v1928 = vsel %vm1899, %v1868, 0
    %v1931 = vsel %vm1899, %v1869, 0
    %v1934 = vsel %vm1899, %v1870, 0
    %v1937 = vsel %vm1899, %v1871, 0
    %v1940 = vsel %vm1899, %v1872, 0
    %v1943 = vsel %vm1899, %v1873, 0
    %v1946 = vsel %vm1899, %v1874, 0
    %v1949 = vsel %vm1899, %v1875, 0
    %v1952 = vsel %vm1899, %v1876, 0
    %v1955 = vsel %vm1899, %v1877, 0
    %v1958 = vsel %vm1899, %v1878, 0
    %v1961 = vsel %vm1899, %v1879, 0
    %v1964 = vsel %vm1899, %v1880, 0
    %v1967 = vsel %vm1899, %v1881, 0
    %v1970 = vsel %vm1899, %v1882, 0
    %v1973 = vsel %vm1899, %v1883, 0
    %v1976 = vsel %vm1899, %v1884, 0
    %v1979 = vsel %vm1899, %v1885, 0
    %v1982 = vsel %vm1899, %v1886, 0
    %v1985 = vsel %vm1899, %v1887, 0
    %v1988 = vsel %vm1899, %v1888, 0
    %v1991 = vsel %vm1899, %v1889, 0
    %v1994 = vsel %vm1899, %v1890, 0
    %1996 = vmatpush.msra.mxu0 0.0
    %1997 = vmatpush.msra.mxu0 0.0
    %1998 = vmatpush.msra.mxu0 0.0
    %1999 = vmatpush.msra.mxu0 0.0
    %2000 = vmatpush.msra.mxu0 0.0
    %2001 = vmatpush.msra.mxu0 0.0
    %2002 = vmatpush.msra.mxu0 0.0
    %2003 = vmatpush.msra.mxu0 0.0
    %2004 = vmatpush.msra.mxu0 0.0
    %2005 = vmatpush.msra.mxu0 0.0
    %2006 = vmatpush.msra.mxu0 0.0
    %2007 = vmatpush.msra.mxu0 0.0
    %2008 = vmatpush.msra.mxu0 %v1894
    %2009 = vmatpush.msra.mxu0 %v1893
    %2010 = vmatpush.msra.mxu0 %v1892
    %2011 = vmatpush.msra.mxu0 %v1891
    %2012 = vmatmul.f32.gmra.mxu0 %v1901
    %v2013 = vpop.f32.mrf.mxu0
    %v2014 = vadd.f32 %v1897, %v2013
    %2015 = vmatmul.f32.gmra.mxu0 %v1904
    %v2016 = vpop.f32.mrf.mxu0
    %v2017 = vadd.f32 %v1897, %v2016
    %2018 = vmatmul.f32.gmra.mxu0 %v1907
    %v2019 = vpop.f32.mrf.mxu0
    %v2020 = vadd.f32 %v1897, %v2019
    %2021 = vmatmul.f32.gmra.mxu0 %v1910
    %v2022 = vpop.f32.mrf.mxu0
    %v2023 = vadd.f32 %v1897, %v2022
    %2024 = vmatmul.f32.gmra.mxu0 %v1913
    %v2025 = vpop.f32.mrf.mxu0
    %v2026 = vadd.f32 %v1897, %v2025
    %2027 = vmatmul.f32.gmra.mxu0 %v1916
    %v2028 = vpop.f32.mrf.mxu0
    %v2029 = vadd.f32 %v1897, %v2028
    %2030 = vmatmul.f32.gmra.mxu0 %v1919
    %v2031 = vpop.f32.mrf.mxu0
    %v2032 = vadd.f32 %v1897, %v2031
    %2033 = vmatmul.f32.gmra.mxu0 %v1922
    %v2034 = vpop.f32.mrf.mxu0
    %v2035 = vadd.f32 %v1897, %v2034
    %2036 = vmatmul.f32.gmra.mxu0 %v1925
    %v2037 = vpop.f32.mrf.mxu0
    %v2038 = vadd.f32 %v1897, %v2037
    %2039 = vmatmul.f32.gmra.mxu0 %v1928
    %v2040 = vpop.f32.mrf.mxu0
    %v2041 = vadd.f32 %v1897, %v2040
    %2042 = vmatmul.f32.gmra.mxu0 %v1931
    %v2043 = vpop.f32.mrf.mxu0
    %v2044 = vadd.f32 %v1897, %v2043
    %2045 = vmatmul.f32.gmra.mxu0 %v1934
    %v2046 = vpop.f32.mrf.mxu0
    %v2047 = vadd.f32 %v1897, %v2046
    %2048 = vmatmul.f32.gmra.mxu0 %v1937
    %v2049 = vpop.f32.mrf.mxu0
    %v2050 = vadd.f32 %v1897, %v2049
    %2051 = vmatmul.f32.gmra.mxu0 %v1940
    %v2052 = vpop.f32.mrf.mxu0
    %v2053 = vadd.f32 %v1897, %v2052
    %2054 = vmatmul.f32.gmra.mxu0 %v1943
    %v2055 = vpop.f32.mrf.mxu0
    %v2056 = vadd.f32 %v1897, %v2055
    %2057 = vmatmul.f32.gmra.mxu0 %v1946
    %v2058 = vpop.f32.mrf.mxu0
    %v2059 = vadd.f32 %v1897, %v2058
    %2060 = vmatmul.f32.gmra.mxu0 %v1949
    %v2061 = vpop.f32.mrf.mxu0
    %v2062 = vadd.f32 %v1897, %v2061
    %2063 = vmatmul.f32.gmra.mxu0 %v1952
    %v2064 = vpop.f32.mrf.mxu0
    %v2065 = vadd.f32 %v1897, %v2064
    %2066 = vmatmul.f32.gmra.mxu0 %v1955
    %v2067 = vpop.f32.mrf.mxu0
    %v2068 = vadd.f32 %v1897, %v2067
    %2069 = vmatmul.f32.gmra.mxu0 %v1958
    %v2070 = vpop.f32.mrf.mxu0
    %v2071 = vadd.f32 %v1897, %v2070
    %2072 = vmatmul.f32.gmra.mxu0 %v1961
    %v2073 = vpop.f32.mrf.mxu0
    %v2074 = vadd.f32 %v1897, %v2073
    %2075 = vmatmul.f32.gmra.mxu0 %v1964
    %v2076 = vpop.f32.mrf.mxu0
    %v2077 = vadd.f32 %v1897, %v2076
    %2078 = vmatmul.f32.gmra.mxu0 %v1967
    %v2079 = vpop.f32.mrf.mxu0
    %v2080 = vadd.f32 %v1897, %v2079
    %2081 = vmatmul.f32.gmra.mxu0 %v1970
    %v2082 = vpop.f32.mrf.mxu0
    %v2083 = vadd.f32 %v1897, %v2082
    %2084 = vmatmul.f32.gmra.mxu0 %v1973
    %v2085 = vpop.f32.mrf.mxu0
    %v2086 = vadd.f32 %v1897, %v2085
    %2087 = vmatmul.f32.gmra.mxu0 %v1976
    %v2088 = vpop.f32.mrf.mxu0
    %v2089 = vadd.f32 %v1897, %v2088
    %2090 = vmatmul.f32.gmra.mxu0 %v1979
    %v2091 = vpop.f32.mrf.mxu0
    %v2092 = vadd.f32 %v1897, %v2091
    %2093 = vmatmul.f32.gmra.mxu0 %v1982
    %v2094 = vpop.f32.mrf.mxu0
    %v2095 = vadd.f32 %v1897, %v2094
    %2096 = vmatmul.f32.gmra.mxu0 %v1985
    %v2097 = vpop.f32.mrf.mxu0
    %v2098 = vadd.f32 %v1897, %v2097
    %2099 = vmatmul.f32.gmra.mxu0 %v1988
    %v2100 = vpop.f32.mrf.mxu0
    %v2101 = vadd.f32 %v1897, %v2100
    %2102 = vmatmul.f32.gmra.mxu0 %v1991
    %v2103 = vpop.f32.mrf.mxu0
    %v2104 = vadd.f32 %v1897, %v2103
    %2105 = vmatmul.f32.gmra.mxu0 %v1994
    %v2106 = vpop.f32.mrf.mxu0
    %v2107 = vadd.f32 %v1897, %v2106
    %2108 = vdwg.mxu0
    %2109 = vrot.lane.b32.xlu0 %v591, 16
    %v2110 = vpop.permute.xlu0 %2109
    %2111 = vrot.lane.b32.xlu0 %v592, 16
    %v2112 = vpop.permute.xlu0 %2111
    %2113 = vrot.lane.b32.xlu0 %v593, 16
    %v2114 = vpop.permute.xlu0 %2113
    %2115 = vrot.lane.b32.xlu0 %v594, 16
    %v2116 = vpop.permute.xlu0 %2115
    %2117 = vrot.lane.b32.xlu0 %v595, 16
    %v2118 = vpop.permute.xlu0 %2117
    %2119 = vrot.lane.b32.xlu0 %v596, 16
    %v2120 = vpop.permute.xlu0 %2119
    %2121 = vrot.lane.b32.xlu0 %v597, 16
    %v2122 = vpop.permute.xlu0 %2121
    %2123 = vrot.lane.b32.xlu0 %v598, 16
    %v2124 = vpop.permute.xlu0 %2123
    %2125 = vrot.lane.b32.xlu0 %v599, 16
    %v2126 = vpop.permute.xlu0 %2125
    %2127 = vrot.lane.b32.xlu0 %v600, 16
    %v2128 = vpop.permute.xlu0 %2127
    %2129 = vrot.lane.b32.xlu0 %v601, 16
    %v2130 = vpop.permute.xlu0 %2129
    %2131 = vrot.lane.b32.xlu0 %v602, 16
    %v2132 = vpop.permute.xlu0 %2131
    %2133 = vrot.lane.b32.xlu0 %v603, 16
    %v2134 = vpop.permute.xlu0 %2133
    %2135 = vrot.lane.b32.xlu0 %v604, 16
    %v2136 = vpop.permute.xlu0 %2135
    %2137 = vrot.lane.b32.xlu0 %v605, 16
    %v2138 = vpop.permute.xlu0 %2137
    %2139 = vrot.lane.b32.xlu0 %v606, 16
    %v2140 = vpop.permute.xlu0 %2139
    %2141 = vrot.lane.b32.xlu0 %v607, 16
    %v2142 = vpop.permute.xlu0 %2141
    %2143 = vrot.lane.b32.xlu0 %v608, 16
    %v2144 = vpop.permute.xlu0 %2143
    %2145 = vrot.lane.b32.xlu0 %v609, 16
    %v2146 = vpop.permute.xlu0 %2145
    %2147 = vrot.lane.b32.xlu0 %v610, 16
    %v2148 = vpop.permute.xlu0 %2147
    %2149 = vrot.lane.b32.xlu0 %v611, 16
    %v2150 = vpop.permute.xlu0 %2149
    %2151 = vrot.lane.b32.xlu0 %v612, 16
    %v2152 = vpop.permute.xlu0 %2151
    %2153 = vrot.lane.b32.xlu0 %v613, 16
    %v2154 = vpop.permute.xlu0 %2153
    %2155 = vrot.lane.b32.xlu0 %v614, 16
    %v2156 = vpop.permute.xlu0 %2155
    %2157 = vrot.lane.b32.xlu0 %v615, 16
    %v2158 = vpop.permute.xlu0 %2157
    %2159 = vrot.lane.b32.xlu0 %v616, 16
    %v2160 = vpop.permute.xlu0 %2159
    %2161 = vrot.lane.b32.xlu0 %v617, 16
    %v2162 = vpop.permute.xlu0 %2161
    %2163 = vrot.lane.b32.xlu0 %v618, 16
    %v2164 = vpop.permute.xlu0 %2163
    %2165 = vrot.lane.b32.xlu0 %v619, 16
    %v2166 = vpop.permute.xlu0 %2165
    %2167 = vrot.lane.b32.xlu0 %v620, 16
    %v2168 = vpop.permute.xlu0 %2167
    %2169 = vrot.lane.b32.xlu0 %v621, 16
    %v2170 = vpop.permute.xlu0 %2169
    %2171 = vrot.lane.b32.xlu0 %v622, 16
    %v2172 = vpop.permute.xlu0 %2171
    %2237 = vrot.lane.b32.xlu0 %v2014, 32
    %v2238 = vpop.permute.xlu0 %2237
    %2239 = vrot.lane.b32.xlu0 %v2017, 32
    %v2240 = vpop.permute.xlu0 %2239
    %2241 = vrot.lane.b32.xlu0 %v2020, 32
    %v2242 = vpop.permute.xlu0 %2241
    %2243 = vrot.lane.b32.xlu0 %v2023, 32
    %v2244 = vpop.permute.xlu0 %2243
    %2245 = vrot.lane.b32.xlu0 %v2026, 32
    %v2246 = vpop.permute.xlu0 %2245
    %2247 = vrot.lane.b32.xlu0 %v2029, 32
    %v2248 = vpop.permute.xlu0 %2247
    %2249 = vrot.lane.b32.xlu0 %v2032, 32
    %v2250 = vpop.permute.xlu0 %2249
    %2251 = vrot.lane.b32.xlu0 %v2035, 32
    %v2252 = vpop.permute.xlu0 %2251
    %2253 = vrot.lane.b32.xlu0 %v2038, 32
    %v2254 = vpop.permute.xlu0 %2253
    %2255 = vrot.lane.b32.xlu0 %v2041, 32
    %v2256 = vpop.permute.xlu0 %2255
    %2257 = vrot.lane.b32.xlu0 %v2044, 32
    %v2258 = vpop.permute.xlu0 %2257
    %2259 = vrot.lane.b32.xlu0 %v2047, 32
    %v2260 = vpop.permute.xlu0 %2259
    %2261 = vrot.lane.b32.xlu0 %v2050, 32
    %v2262 = vpop.permute.xlu0 %2261
    %2263 = vrot.lane.b32.xlu0 %v2053, 32
    %v2264 = vpop.permute.xlu0 %2263
    %2265 = vrot.lane.b32.xlu0 %v2056, 32
    %v2266 = vpop.permute.xlu0 %2265
    %2267 = vrot.lane.b32.xlu0 %v2059, 32
    %v2268 = vpop.permute.xlu0 %2267
    %2269 = vrot.lane.b32.xlu0 %v2062, 32
    %v2270 = vpop.permute.xlu0 %2269
    %2271 = vrot.lane.b32.xlu0 %v2065, 32
    %v2272 = vpop.permute.xlu0 %2271
    %2273 = vrot.lane.b32.xlu0 %v2068, 32
    %v2274 = vpop.permute.xlu0 %2273
    %2275 = vrot.lane.b32.xlu0 %v2071, 32
    %v2276 = vpop.permute.xlu0 %2275
    %2277 = vrot.lane.b32.xlu0 %v2074, 32
    %v2278 = vpop.permute.xlu0 %2277
    %2279 = vrot.lane.b32.xlu0 %v2077, 32
    %v2280 = vpop.permute.xlu0 %2279
    %2281 = vrot.lane.b32.xlu0 %v2080, 32
    %v2282 = vpop.permute.xlu0 %2281
    %2283 = vrot.lane.b32.xlu0 %v2083, 32
    %v2284 = vpop.permute.xlu0 %2283
    %2285 = vrot.lane.b32.xlu0 %v2086, 32
    %v2286 = vpop.permute.xlu0 %2285
    %2287 = vrot.lane.b32.xlu0 %v2089, 32
    %v2288 = vpop.permute.xlu0 %2287
    %2289 = vrot.lane.b32.xlu0 %v2092, 32
    %v2290 = vpop.permute.xlu0 %2289
    %2291 = vrot.lane.b32.xlu0 %v2095, 32
    %v2292 = vpop.permute.xlu0 %2291
    %2293 = vrot.lane.b32.xlu0 %v2098, 32
    %v2294 = vpop.permute.xlu0 %2293
    %2295 = vrot.lane.b32.xlu0 %v2101, 32
    %v2296 = vpop.permute.xlu0 %2295
    %2297 = vrot.lane.b32.xlu0 %v2104, 32
    %v2298 = vpop.permute.xlu0 %2297
    %2299 = vrot.lane.b32.xlu0 %v2107, 32
    %v2300 = vpop.permute.xlu0 %2299
    %v2333 = vsel %vm629, %v1210, %v2110
    %v2334 = vsel %vm629, %v1225, %v2112
    %v2335 = vsel %vm629, %v1240, %v2114
    %v2336 = vsel %vm629, %v1255, %v2116
    %v2337 = vsel %vm629, %v1270, %v2118
    %v2338 = vsel %vm629, %v1285, %v2120
    %v2339 = vsel %vm629, %v1300, %v2122
    %v2340 = vsel %vm629, %v1315, %v2124
    %v2341 = vsel %vm629, %v1330, %v2126
    %v2342 = vsel %vm629, %v1345, %v2128
    %v2343 = vsel %vm629, %v1360, %v2130
    %v2344 = vsel %vm629, %v1375, %v2132
    %v2345 = vsel %vm629, %v1390, %v2134
    %v2346 = vsel %vm629, %v1405, %v2136
    %v2347 = vsel %vm629, %v1420, %v2138
    %v2348 = vsel %vm629, %v1435, %v2140
    %v2349 = vsel %vm629, %v1450, %v2142
    %v2350 = vsel %vm629, %v1465, %v2144
    %v2351 = vsel %vm629, %v1480, %v2146
    %v2352 = vsel %vm629, %v1495, %v2148
    %v2353 = vsel %vm629, %v1510, %v2150
    %v2354 = vsel %vm629, %v1525, %v2152
    %v2355 = vsel %vm629, %v1540, %v2154
    %v2356 = vsel %vm629, %v1555, %v2156
    %v2357 = vsel %vm629, %v1570, %v2158
    %v2358 = vsel %vm629, %v1585, %v2160
    %v2359 = vsel %vm629, %v1600, %v2162
    %v2360 = vsel %vm629, %v1615, %v2164
    %v2361 = vsel %vm629, %v1630, %v2166
    %v2362 = vsel %vm629, %v1645, %v2168
    %v2363 = vsel %vm629, %v1660, %v2170
    %v2364 = vsel %vm629, %v1675, %v2172
    %v2365 = vsel %vm1899, %v2333, %v2238
    %v2366 = vsel %vm1899, %v2334, %v2240
    %v2367 = vsel %vm1899, %v2335, %v2242
    %v2368 = vsel %vm1899, %v2336, %v2244
    %v2369 = vsel %vm1899, %v2337, %v2246
    %v2370 = vsel %vm1899, %v2338, %v2248
    %v2371 = vsel %vm1899, %v2339, %v2250
    %v2372 = vsel %vm1899, %v2340, %v2252
    %v2373 = vsel %vm1899, %v2341, %v2254
    %v2374 = vsel %vm1899, %v2342, %v2256
    %v2375 = vsel %vm1899, %v2343, %v2258
    %v2376 = vsel %vm1899, %v2344, %v2260
    %v2377 = vsel %vm1899, %v2345, %v2262
    %v2378 = vsel %vm1899, %v2346, %v2264
    %v2379 = vsel %vm1899, %v2347, %v2266
    %v2380 = vsel %vm1899, %v2348, %v2268
    %v2381 = vsel %vm1899, %v2349, %v2270
    %v2382 = vsel %vm1899, %v2350, %v2272
    %v2383 = vsel %vm1899, %v2351, %v2274
    %v2384 = vsel %vm1899, %v2352, %v2276
    %v2385 = vsel %vm1899, %v2353, %v2278
    %v2386 = vsel %vm1899, %v2354, %v2280
    %v2387 = vsel %vm1899, %v2355, %v2282
    %v2388 = vsel %vm1899, %v2356, %v2284
    %v2389 = vsel %vm1899, %v2357, %v2286
    %v2390 = vsel %vm1899, %v2358, %v2288
    %v2391 = vsel %vm1899, %v2359, %v2290
    %v2392 = vsel %vm1899, %v2360, %v2292
    %v2393 = vsel %vm1899, %v2361, %v2294
    %v2394 = vsel %vm1899, %v2362, %v2296
    %v2395 = vsel %vm1899, %v2363, %v2298
    %v2396 = vsel %vm1899, %v2364, %v2300
    %2397 = vst [vmem:[#allocation2] sm:$0xff] %v2365
    %2398 = vst [vmem:[#allocation2 + $0x8] sm:$0xff] %v2366
    %2399 = vst [vmem:[#allocation2 + $0x10] sm:$0xff] %v2367
    %2400 = vst [vmem:[#allocation2 + $0x18] sm:$0xff] %v2368
    %2401 = vst [vmem:[#allocation2 + $0x20] sm:$0xff] %v2369
    %2402 = vst [vmem:[#allocation2 + $0x28] sm:$0xff] %v2370
    %2403 = vst [vmem:[#allocation2 + $0x30] sm:$0xff] %v2371
    %2404 = vst [vmem:[#allocation2 + $0x38] sm:$0xff] %v2372
    %2405 = vst [vmem:[#allocation2 + $0x40] sm:$0xff] %v2373
    %2406 = vst [vmem:[#allocation2 + $0x48] sm:$0xff] %v2374
    %2407 = vst [vmem:[#allocation2 + $0x50] sm:$0xff] %v2375
    %2408 = vst [vmem:[#allocation2 + $0x58] sm:$0xff] %v2376
    %2409 = vst [vmem:[#allocation2 + $0x60] sm:$0xff] %v2377
    %2410 = vst [vmem:[#allocation2 + $0x68] sm:$0xff] %v2378
    %2411 = vst [vmem:[#allocation2 + $0x70] sm:$0xff] %v2379
    %2412 = vst [vmem:[#allocation2 + $0x78] sm:$0xff] %v2380
    %2413 = vst [vmem:[#allocation2 + $0x80] sm:$0xff] %v2381
    %2414 = vst [vmem:[#allocation2 + $0x88] sm:$0xff] %v2382
    %2415 = vst [vmem:[#allocation2 + $0x90] sm:$0xff] %v2383
    %2416 = vst [vmem:[#allocation2 + $0x98] sm:$0xff] %v2384
    %2417 = vst [vmem:[#allocation2 + $0xa0] sm:$0xff] %v2385
    %2418 = vst [vmem:[#allocation2 + $0xa8] sm:$0xff] %v2386
    %2419 = vst [vmem:[#allocation2 + $0xb0] sm:$0xff] %v2387
    %2420 = vst [vmem:[#allocation2 + $0xb8] sm:$0xff] %v2388
    %2421 = vst [vmem:[#allocation2 + $0xc0] sm:$0xff] %v2389
    %2422 = vst [vmem:[#allocation2 + $0xc8] sm:$0xff] %v2390
    %2423 = vst [vmem:[#allocation2 + $0xd0] sm:$0xff] %v2391
    %2424 = vst [vmem:[#allocation2 + $0xd8] sm:$0xff] %v2392
    %2425 = vst [vmem:[#allocation2 + $0xe0] sm:$0xff] %v2393
    %2426 = vst [vmem:[#allocation2 + $0xe8] sm:$0xff] %v2394
    %2427 = vst [vmem:[#allocation2 + $0xf0] sm:$0xff] %v2395
    %2428 = vst [vmem:[#allocation2 + $0xf8] sm:$0xff] %v2396
    // Predicated region
    $region54: #{tpu_custom_call.1} parent=1 // pred_check
      _
    $region55: #{tpu_custom_call.1} parent=1 // pred_check_branch
      %2430 = sbr.rel (0) target = $region57
    $region56: #{tpu_custom_call.1} parent=1 // pred_region
      %2432 = vsyncadd [#allocation3], 0
      %s2433 = sshll.u32 [#allocation2], 4
      %s2434 = int_to_ptr.vmem [resolvable:$true] %s2433
      %s2435 = sshll.u32 %s13, 4
      %s2436 = int_to_ptr.hbm [resolvable:$true] %s2435
      %2441 = dma.vmem_to_hbm [thread:$0]  %s2434, 4096, %s2436, [#allocation3], 128, 128, 8
    $region57: #{tpu_custom_call.1} parent=1 // pred_fallthru
      _
    // Predicated region
    $region58: #{tpu_custom_call.1} parent=1 // pred_check
      _
    $region59: #{tpu_custom_call.1} parent=1 // pred_check_branch
      %2443 = sbr.rel (0) target = $region61
    $region60: #{tpu_custom_call.1} parent=1 // pred_region
      %2445 = dma.done [#allocation3], 4096
    $region61: #{tpu_custom_call.1} parent=1 // pred_fallthru
      _
    %2446 = vsyncpa [#allocation3], 1

</llo_original>
